<compile_context>
chip_gen: v7x
topology: tpu7x:2x2x1
jax: 0.10.0
libtpu: 0.0.40
codegen_flags: <defaults>
</compile_context>

<pallas_src>
import functools

import jax
import jax.numpy as jnp
from jax import lax
from jax.experimental import pallas as pl
from jax.experimental.pallas import tpu as pltpu

LN_EPS = 1e-5                      # torch.nn.LayerNorm default
NEG_INF = -1e30                    # bias for padded vocab columns
VMEM_LIMIT_BYTES = 64 * 1024 * 1024
HEAD_MXU_DTYPE = jnp.float32       # set to jnp.bfloat16 on v6e/v7x for speed


def _round_up(x, m):
    return (x + m - 1) // m * m


def _pick_row_tile(n_rows):
    # Largest power-of-two row tile that divides n_rows and leaves >=2 grid
    # steps (so the head pipeline actually double-buffers).
    for cand in (512, 256, 128, 64, 32, 16, 8):
        if n_rows % cand == 0 and n_rows // cand >= 2:
            return cand
    return n_rows


# ----------------------------------------------------------------------------
# Fused 2-layer GRU kernel.
#   grid = (T_pad // tile_t,), "arbitrary" (serial scan); h1/h2 persist in
#   VMEM scratch across grid steps; layer-1 input projection hoisted out of
#   the recurrence as one MXU matmul per time tile.
#   Rows are time-major: row index = t * Bp + b.
#   Gate order matches PyTorch nn.GRU: [r, z, n].
# ----------------------------------------------------------------------------
def fused_gru_kernel(x_ref, w1ih_ref, b1ih_ref, w1hh_ref, b1hh_ref,
                     w2ih_ref, b2ih_ref, w2hh_ref, b2hh_ref,
                     out_ref, gi1_scr, h1_scr, h2_scr):
    Bp, H = h1_scr.shape
    tile_rows = x_ref.shape[0]
    tile_t = tile_rows // Bp

    @pl.when(pl.program_id(0) == 0)
    def _init():
        h1_scr[...] = jnp.zeros_like(h1_scr)
        h2_scr[...] = jnp.zeros_like(h2_scr)

    # Phase 1: layer-1 input projection for the whole time tile (hoisted out
    # of the serial recurrence; result stays in VMEM, never hits HBM).
    gi1_scr[...] = (
        jnp.dot(x_ref[...], w1ih_ref[...], preferred_element_type=jnp.float32)
        + b1ih_ref[...])

    # Load loop-invariant biases once (avoid re-materializing per step).
    b1hh = b1hh_ref[...]
    b2ih = b2ih_ref[...]
    b2hh = b2hh_ref[...]

    # Phase 2: serial recurrence over the time tile.
    # NOTE: gate slices at H boundaries are lane-aligned when H % 128 == 0
    # (production configs); the toy H=32 fits in a single lane tile anyway.
    def step(t, carry):
        row = pl.multiple_of(t * Bp, Bp)
        gi1 = gi1_scr[pl.ds(row, Bp), :]                        # (Bp, 3H)
        h1 = h1_scr[...]
        h2 = h2_scr[...]

        # Layer 1 ("lstm" in the PyTorch module, actually a GRU).
        gh1 = jnp.dot(h1, w1hh_ref[...],
                      preferred_element_type=jnp.float32) + b1hh
        r1 = jax.nn.sigmoid(gi1[:, 0:H] + gh1[:, 0:H])
        z1 = jax.nn.sigmoid(gi1[:, H:2 * H] + gh1[:, H:2 * H])
        n1 = jnp.tanh(gi1[:, 2 * H:3 * H] + r1 * gh1[:, 2 * H:3 * H])
        h1n = (1.0 - z1) * n1 + z1 * h1

        # Layer 2 consumes layer-1's fresh hidden state directly (fused; no
        # HBM round-trip of h1).
        gi2 = jnp.dot(h1n, w2ih_ref[...],
                      preferred_element_type=jnp.float32) + b2ih
        gh2 = jnp.dot(h2, w2hh_ref[...],
                      preferred_element_type=jnp.float32) + b2hh
        r2 = jax.nn.sigmoid(gi2[:, 0:H] + gh2[:, 0:H])
        z2 = jax.nn.sigmoid(gi2[:, H:2 * H] + gh2[:, H:2 * H])
        n2 = jnp.tanh(gi2[:, 2 * H:3 * H] + r2 * gh2[:, 2 * H:3 * H])
        h2n = (1.0 - z2) * n2 + z2 * h2

        h1_scr[...] = h1n
        h2_scr[...] = h2n
        # Downstream only needs lstm_out + gru_out, so write the sum directly
        # (halves output HBM traffic).
        out_ref[pl.ds(row, Bp), :] = h1n + h2n
        return carry

    lax.fori_loop(0, tile_t, step, 0)


def fused_gru(x_flat, w1ih, b1ih, w1hh, b1hh, w2ih, b2ih, w2hh, b2hh,
              *, bp, tile_t):
    """x_flat: (T_pad*Bp, H) time-major flattened rows. Weights pre-transposed
    to (in, 3H); biases (1, 3H)."""
    rows, H = x_flat.shape
    t_pad = rows // bp
    n_t = t_pad // tile_t
    tile_rows = tile_t * bp

    def resident(a):
        return pl.BlockSpec(a.shape, lambda t: (0, 0))

    grid_spec = pltpu.PrefetchScalarGridSpec(
        num_scalar_prefetch=0,
        grid=(n_t,),
        in_specs=[pl.BlockSpec((tile_rows, H), lambda t: (t, 0)),
                  resident(w1ih), resident(b1ih),
                  resident(w1hh), resident(b1hh),
                  resident(w2ih), resident(b2ih),
                  resident(w2hh), resident(b2hh)],
        out_specs=pl.BlockSpec((tile_rows, H), lambda t: (t, 0)),
        scratch_shapes=[pltpu.VMEM((tile_rows, 3 * H), jnp.float32),
                        pltpu.VMEM((bp, H), jnp.float32),
                        pltpu.VMEM((bp, H), jnp.float32)])

    cost = pl.CostEstimate(
        flops=8 * rows * H * 3 * H,             # 1 input-proj + 3 recurrent matmuls
        transcendentals=6 * rows * H,           # sigmoid/tanh, both layers
        bytes_accessed=4 * (2 * rows * H + 12 * H * H))

    return pl.pallas_call(
        fused_gru_kernel,
        out_shape=jax.ShapeDtypeStruct((rows, H), jnp.float32),
        grid_spec=grid_spec,
        compiler_params=pltpu.CompilerParams(
            dimension_semantics=("arbitrary",),   # serial scan: state in scratch
            vmem_limit_bytes=VMEM_LIMIT_BYTES),
        cost_estimate=cost,
    )(x_flat, w1ih, b1ih, w1hh, b1hh, w2ih, b2ih, w2hh, b2hh)


# ----------------------------------------------------------------------------
# Head kernel: mask (pack/pad_packed zeroing) + LayerNorm + tied linear head
# + log_softmax, tiled over rows. Weights / LN params VMEM-resident.
# ----------------------------------------------------------------------------
def head_kernel(x_ref, mask_ref, gamma_ref, beta_ref, w_ref, b_ref, out_ref):
    x = x_ref[...] * mask_ref[...]                       # (tile_n, H), f32
    mean = jnp.mean(x, axis=-1, keepdims=True)
    c = x - mean
    var = jnp.mean(c * c, axis=-1, keepdims=True)
    y = c * lax.rsqrt(var + LN_EPS) * gamma_ref[...] + beta_ref[...]
    logits = jnp.dot(y.astype(w_ref.dtype), w_ref[...],
                     preferred_element_type=jnp.float32) + b_ref[...]
    m = jnp.max(logits, axis=-1, keepdims=True)
    lse = m + jnp.log(jnp.sum(jnp.exp(logits - m), axis=-1, keepdims=True))
    out_ref[...] = logits - lse


def head(x, mask, gamma, beta, w_t, bias, *, tile_n):
    """x: (N, H) batch-major rows; mask: (N, 1); w_t: (H, Vp) pre-transposed,
    vocab padded to Vp (multiple of 128) with bias=-1e30 on padded columns."""
    n_rows, H = x.shape
    Vp = w_t.shape[1]

    def resident(a):
        return pl.BlockSpec(a.shape, lambda i: (0, 0))

    grid_spec = pltpu.PrefetchScalarGridSpec(
        num_scalar_prefetch=0,
        grid=(n_rows // tile_n,),
        in_specs=[pl.BlockSpec((tile_n, H), lambda i: (i, 0)),
                  pl.BlockSpec((tile_n, 1), lambda i: (i, 0)),
                  resident(gamma), resident(beta),
                  resident(w_t), resident(bias)],
        out_specs=pl.BlockSpec((tile_n, Vp), lambda i: (i, 0)))

    cost = pl.CostEstimate(
        flops=2 * n_rows * H * Vp + 8 * n_rows * Vp,
        transcendentals=n_rows * Vp,
        bytes_accessed=4 * (n_rows * H + n_rows * Vp)
        + H * Vp * w_t.dtype.itemsize)

    return pl.pallas_call(
        head_kernel,
        out_shape=jax.ShapeDtypeStruct((n_rows, Vp), jnp.float32),
        grid_spec=grid_spec,
        compiler_params=pltpu.CompilerParams(
            dimension_semantics=("parallel",),    # independent rows -> megacore
            vmem_limit_bytes=VMEM_LIMIT_BYTES),
        cost_estimate=cost,
    )(x, mask, gamma, beta, w_t, bias)


# ----------------------------------------------------------------------------
# Parameter init (PyTorch-style) and one-time preparation.
# ----------------------------------------------------------------------------
def init_params(key, vocab_size, hidden_size):
    H = hidden_size
    ks = jax.random.split(key, 10)
    s = 1.0 / jnp.sqrt(jnp.float32(H))
    u = lambda k, shape: jax.random.uniform(k, shape, jnp.float32, -s, s)
    emb = jax.random.normal(ks[0], (vocab_size, H), jnp.float32)
    return dict(
        embedding=emb,
        gru1_w_ih=u(ks[1], (3 * H, H)), gru1_w_hh=u(ks[2], (3 * H, H)),
        gru1_b_ih=u(ks[3], (3 * H,)), gru1_b_hh=u(ks[4], (3 * H,)),
        gru2_w_ih=u(ks[5], (3 * H, H)), gru2_w_hh=u(ks[6], (3 * H, H)),
        gru2_b_ih=u(ks[7], (3 * H,)), gru2_b_hh=u(ks[8], (3 * H,)),
        ln_gamma=jnp.ones((H,), jnp.float32),
        ln_beta=jnp.zeros((H,), jnp.float32),
        head_b=u(ks[9], (vocab_size,)),          # head.weight tied to embedding
    )


def prepare_params(params):
    """One-time weight prep (outside the per-call hot path): transpose GRU /
    head weights into (in, out) layout, pad vocab to a multiple of 128
    (lane-dense head output), reshape biases / LN params to 2-D."""
    H = params['ln_gamma'].shape[0]
    V = params['embedding'].shape[0]
    Vp = _round_up(V, 128)
    head_w_t = jnp.pad(params['embedding'].T.astype(HEAD_MXU_DTYPE),
                       ((0, 0), (0, Vp - V)))                       # (H, Vp)
    head_b = jnp.concatenate(
        [params['head_b'], jnp.full((Vp - V,), NEG_INF, jnp.float32)]
    ).reshape(1, Vp)
    return dict(
        embedding=params['embedding'],
        w1ih=params['gru1_w_ih'].T, w1hh=params['gru1_w_hh'].T,     # (H, 3H)
        b1ih=params['gru1_b_ih'].reshape(1, 3 * H),
        b1hh=params['gru1_b_hh'].reshape(1, 3 * H),
        w2ih=params['gru2_w_ih'].T, w2hh=params['gru2_w_hh'].T,
        b2ih=params['gru2_b_ih'].reshape(1, 3 * H),
        b2hh=params['gru2_b_hh'].reshape(1, 3 * H),
        ln_gamma=params['ln_gamma'].reshape(1, H),
        ln_beta=params['ln_beta'].reshape(1, H),
        head_w_t=head_w_t,
        head_b=head_b,
    )


# ----------------------------------------------------------------------------
# Model forward (glue: embedding gather, padding, one small hsum transpose).
# ----------------------------------------------------------------------------
def classic_language_model(prepared, text, loss_mask, *, vocab_size):
    B, T = text.shape
    H = prepared['ln_gamma'].shape[1]
    Vp = prepared['head_b'].shape[1]

    # ---- static padding / tiling decisions ----
    Bp = _round_up(B, 8)                      # sublane-aligned recurrence batch
    if T > 128:
        tile_t = 128
        T_pad = _round_up(T, tile_t)
    else:
        T_pad = _round_up(T, 2)
        tile_t = T_pad // 2 if T_pad >= 4 else T_pad

    # ---- embedding gather directly in time-major order (no activation
    #      transpose); SpatialDropout == identity at eval time ----
    text_p = jnp.pad(text, ((0, Bp - B), (0, T_pad - T)))
    emb_tm = prepared['embedding'][text_p.T].astype(jnp.float32)   # (T_pad,Bp,H)
    x_flat = emb_tm.reshape(T_pad * Bp, H)

    # ---- fused 2-layer GRU, time-tiled, hidden state in persistent scratch --
    hsum = fused_gru(x_flat,
                     prepared['w1ih'], prepared['b1ih'],
                     prepared['w1hh'], prepared['b1hh'],
                     prepared['w2ih'], prepared['b2ih'],
                     prepared['w2hh'], prepared['b2hh'],
                     bp=Bp, tile_t=tile_t)                         # (T_pad*Bp,H)

    # pack/pad_packed semantics: zero outputs at t >= length(b) (applied as a
    # mask in the head kernel).
    lengths = jnp.sum(loss_mask, axis=1).astype(jnp.int32)
    valid = (jnp.arange(T)[None, :] < lengths[:, None]).astype(jnp.float32)
    valid_p = jnp.pad(valid, ((0, Bp - B), (0, T_pad - T)))        # (Bp, T_pad)

    # One small transpose over (T_pad, Bp, H) so the head reads/writes
    # batch-major rows and the big (N, Vp) output needs no transpose at all.
    hsum_bm = hsum.reshape(T_pad, Bp, H).transpose(1, 0, 2).reshape(Bp * T_pad, H)
    mask_bm = valid_p.reshape(Bp * T_pad, 1)

    n_rows = Bp * T_pad
    tile_n = _pick_row_tile(n_rows)

    logp = head(hsum_bm, mask_bm,
                prepared['ln_gamma'], prepared['ln_beta'],
                prepared['head_w_t'], prepared['head_b'],
                tile_n=tile_n)                                     # (N, Vp)

    return logp.reshape(Bp, T_pad, Vp)[:B, :T, :vocab_size]


if __name__ == "__main__":
    VOCAB = 64
    HIDDEN = 32          # hidden_size == embedding_dim (weight tying)
    B, T = 2, 8

    key = jax.random.PRNGKey(0)
    k_param, k_text = jax.random.split(key)
    params = init_params(k_param, VOCAB, HIDDEN)
    prepared = prepare_params(params)    # one-time weight transposes / padding

    text = jax.random.randint(k_text, (B, T), 0, VOCAB, dtype=jnp.int32)
    lengths = jnp.array([8, 5], dtype=jnp.int32)
    loss_mask = (jnp.arange(T)[None, :] < lengths[:, None]).astype(jnp.float32)

    forward = jax.jit(functools.partial(classic_language_model,
                                        vocab_size=VOCAB))
    out = forward(prepared, text, loss_mask)
    jax.block_until_ready(out)
    assert out.shape == (B, T, VOCAB)
    # TODO(synk): SpatialDropout is treated as inference-mode identity (no RNG dropout in kernel).
    print("KERNEL_OK")
</pallas_src>

<mosaic_0001>
module attributes {stable_mosaic.version = 11 : i64} {
  func.func @fused_gru_kernel(%arg0: i32, %arg1: memref<32x32xf32, #tpu.memory_space<vmem>>, %arg2: memref<32x96xf32, #tpu.memory_space<vmem>>, %arg3: memref<1x96xf32, #tpu.memory_space<vmem>>, %arg4: memref<32x96xf32, #tpu.memory_space<vmem>>, %arg5: memref<1x96xf32, #tpu.memory_space<vmem>>, %arg6: memref<32x96xf32, #tpu.memory_space<vmem>>, %arg7: memref<1x96xf32, #tpu.memory_space<vmem>>, %arg8: memref<32x96xf32, #tpu.memory_space<vmem>>, %arg9: memref<1x96xf32, #tpu.memory_space<vmem>>, %arg10: memref<32x32xf32, #tpu.memory_space<vmem>>, %arg11: memref<32x96xf32, #tpu.memory_space<vmem>>, %arg12: memref<8x32xf32, #tpu.memory_space<vmem>>, %arg13: memref<8x32xf32, #tpu.memory_space<vmem>>) attributes {dimension_semantics = [#tpu.dimension_semantics<arbitrary>], iteration_bounds = array<i64: 2>, scalar_prefetch = 0 : i64, scratch_operands = 3 : i64, tpu.core_type = #tpu.core_type<tc>, window_params = [{transform_indices = @transform_0, window_bounds = array<i64: 32, 32>}, {pipeline_mode = #tpu.pipeline_mode<synchronous>, transform_indices = @transform_1, window_bounds = array<i64: 32, 96>}, {pipeline_mode = #tpu.pipeline_mode<synchronous>, transform_indices = @transform_2, window_bounds = array<i64: 1, 96>}, {pipeline_mode = #tpu.pipeline_mode<synchronous>, transform_indices = @transform_3, window_bounds = array<i64: 32, 96>}, {pipeline_mode = #tpu.pipeline_mode<synchronous>, transform_indices = @transform_4, window_bounds = array<i64: 1, 96>}, {pipeline_mode = #tpu.pipeline_mode<synchronous>, transform_indices = @transform_5, window_bounds = array<i64: 32, 96>}, {pipeline_mode = #tpu.pipeline_mode<synchronous>, transform_indices = @transform_6, window_bounds = array<i64: 1, 96>}, {pipeline_mode = #tpu.pipeline_mode<synchronous>, transform_indices = @transform_7, window_bounds = array<i64: 32, 96>}, {pipeline_mode = #tpu.pipeline_mode<synchronous>, transform_indices = @transform_8, window_bounds = array<i64: 1, 96>}, {transform_indices = @transform_9, window_bounds = array<i64: 32, 32>}]} {
    %c0_i32 = arith.constant 0 : i32
    %0 = arith.cmpi eq, %arg0, %c0_i32 : i32
    %1 = arith.extui %0 : i1 to i32
    %c0_i32_0 = arith.constant 0 : i32
    %2 = arith.cmpi ne, %1, %c0_i32_0 : i32
    scf.if %2 {
      %cst_16 = arith.constant 0.000000e+00 : f32
      %14 = vector.broadcast %cst_16 : f32 to vector<8x32xf32>
      %c0_17 = arith.constant 0 : index
      %c0_18 = arith.constant 0 : index
      %15 = vector.load %arg12[%c0_17, %c0_18] : memref<8x32xf32, #tpu.memory_space<vmem>>, vector<8x32xf32>
      tpu.vector_store %arg12[%c0_17, %c0_18], %14 {strides = array<i32>} : memref<8x32xf32, #tpu.memory_space<vmem>>, vector<8x32xf32>,
      %cst_19 = arith.constant 0.000000e+00 : f32
      %16 = vector.broadcast %cst_19 : f32 to vector<8x32xf32>
      %c0_20 = arith.constant 0 : index
      %c0_21 = arith.constant 0 : index
      %17 = vector.load %arg13[%c0_20, %c0_21] : memref<8x32xf32, #tpu.memory_space<vmem>>, vector<8x32xf32>
      tpu.vector_store %arg13[%c0_20, %c0_21], %16 {strides = array<i32>} : memref<8x32xf32, #tpu.memory_space<vmem>>, vector<8x32xf32>,
    } else {
    }
    %c0 = arith.constant 0 : index
    %c0_1 = arith.constant 0 : index
    %3 = vector.load %arg1[%c0, %c0_1] : memref<32x32xf32, #tpu.memory_space<vmem>>, vector<32x32xf32>
    %c0_2 = arith.constant 0 : index
    %c0_3 = arith.constant 0 : index
    %4 = vector.load %arg2[%c0_2, %c0_3] : memref<32x96xf32, #tpu.memory_space<vmem>>, vector<32x96xf32>
    %cst = arith.constant dense<0.000000e+00> : vector<32x96xf32>
    %5 = tpu.matmul %3, %4, %cst {dimension_numbers = #tpu.dot_dimension_numbers<[1], [0], [0], [1], [0, 0, 1, 1], [], []>} : vector<32x32xf32>, vector<32x96xf32>, vector<32x96xf32> -> vector<32x96xf32>
    %c0_4 = arith.constant 0 : index
    %c0_5 = arith.constant 0 : index
    %6 = vector.load %arg3[%c0_4, %c0_5] : memref<1x96xf32, #tpu.memory_space<vmem>>, vector<1x96xf32>
    %7 = vector.broadcast %6 : vector<1x96xf32> to vector<32x96xf32>
    %8 = arith.addf %5, %7 : vector<32x96xf32>
    %c0_6 = arith.constant 0 : index
    %c0_7 = arith.constant 0 : index
    %9 = vector.load %arg11[%c0_6, %c0_7] : memref<32x96xf32, #tpu.memory_space<vmem>>, vector<32x96xf32>
    tpu.vector_store %arg11[%c0_6, %c0_7], %8 {strides = array<i32>} : memref<32x96xf32, #tpu.memory_space<vmem>>, vector<32x96xf32>,
    %c0_8 = arith.constant 0 : index
    %c0_9 = arith.constant 0 : index
    %10 = vector.load %arg5[%c0_8, %c0_9] : memref<1x96xf32, #tpu.memory_space<vmem>>, vector<1x96xf32>
    %c0_10 = arith.constant 0 : index
    %c0_11 = arith.constant 0 : index
    %11 = vector.load %arg7[%c0_10, %c0_11] : memref<1x96xf32, #tpu.memory_space<vmem>>, vector<1x96xf32>
    %c0_12 = arith.constant 0 : index
    %c0_13 = arith.constant 0 : index
    %12 = vector.load %arg9[%c0_12, %c0_13] : memref<1x96xf32, #tpu.memory_space<vmem>>, vector<1x96xf32>
    %c0_i32_14 = arith.constant 0 : i32
    %c4_i32 = arith.constant 4 : i32
    %13 = arith.addi %c0_i32_14, %c4_i32 : i32
    %c1_i32 = arith.constant 1 : i32
    scf.for %arg14 = %c0_i32_14 to %13 step %c1_i32  : i32 {
      %c8_i32 = arith.constant 8 : i32
      %14 = arith.muli %arg14, %c8_i32 : i32
      %15 = tpu.assume_multiple %14, 8 : i32
      %16 = arith.index_cast %15 : i32 to index
      %c0_16 = arith.constant 0 : index
      %17 = vector.load %arg11[%16, %c0_16] : memref<32x96xf32, #tpu.memory_space<vmem>>, vector<8x96xf32>
      %c0_17 = arith.constant 0 : index
      %c0_18 = arith.constant 0 : index
      %18 = vector.load %arg12[%c0_17, %c0_18] : memref<8x32xf32, #tpu.memory_space<vmem>>, vector<8x32xf32>
      %c0_19 = arith.constant 0 : index
      %c0_20 = arith.constant 0 : index
      %19 = vector.load %arg13[%c0_19, %c0_20] : memref<8x32xf32, #tpu.memory_space<vmem>>, vector<8x32xf32>
      %c0_21 = arith.constant 0 : index
      %c0_22 = arith.constant 0 : index
      %20 = vector.load %arg4[%c0_21, %c0_22] : memref<32x96xf32, #tpu.memory_space<vmem>>, vector<32x96xf32>
      %cst_23 = arith.constant dense<0.000000e+00> : vector<8x96xf32>
      %21 = tpu.matmul %18, %20, %cst_23 {dimension_numbers = #tpu.dot_dimension_numbers<[1], [0], [0], [1], [0, 0, 1, 1], [], []>} : vector<8x32xf32>, vector<32x96xf32>, vector<8x96xf32> -> vector<8x96xf32>
      %22 = vector.broadcast %10 : vector<1x96xf32> to vector<8x96xf32>
      %23 = arith.addf %21, %22 : vector<8x96xf32>
      %24 = vector.extract_strided_slice %17 {offsets = [0, 0], sizes = [8, 32], strides = [1, 1]} : vector<8x96xf32> to vector<8x32xf32>
      %25 = vector.extract_strided_slice %23 {offsets = [0, 0], sizes = [8, 32], strides = [1, 1]} : vector<8x96xf32> to vector<8x32xf32>
      %26 = arith.addf %24, %25 : vector<8x32xf32>
      %27 = arith.negf %26 : vector<8x32xf32>
      %28 = math.exp %27 : vector<8x32xf32>
      %cst_24 = arith.constant 1.000000e+00 : f32
      %29 = vector.broadcast %cst_24 : f32 to vector<8x32xf32>
      %30 = arith.addf %29, %28 : vector<8x32xf32>
      %31 = arith.divf %29, %30 : vector<8x32xf32>
      %32 = vector.extract_strided_slice %17 {offsets = [0, 32], sizes = [8, 32], strides = [1, 1]} : vector<8x96xf32> to vector<8x32xf32>
      %33 = vector.extract_strided_slice %23 {offsets = [0, 32], sizes = [8, 32], strides = [1, 1]} : vector<8x96xf32> to vector<8x32xf32>
      %34 = arith.addf %32, %33 : vector<8x32xf32>
      %35 = arith.negf %34 : vector<8x32xf32>
      %36 = math.exp %35 : vector<8x32xf32>
      %cst_25 = arith.constant 1.000000e+00 : f32
      %37 = vector.broadcast %cst_25 : f32 to vector<8x32xf32>
      %38 = arith.addf %37, %36 : vector<8x32xf32>
      %39 = arith.divf %37, %38 : vector<8x32xf32>
      %40 = vector.extract_strided_slice %17 {offsets = [0, 64], sizes = [8, 32], strides = [1, 1]} : vector<8x96xf32> to vector<8x32xf32>
      %41 = vector.extract_strided_slice %23 {offsets = [0, 64], sizes = [8, 32], strides = [1, 1]} : vector<8x96xf32> to vector<8x32xf32>
      %42 = arith.mulf %31, %41 : vector<8x32xf32>
      %43 = arith.addf %40, %42 : vector<8x32xf32>
      %44 = math.tanh %43 : vector<8x32xf32>
      %cst_26 = arith.constant 1.000000e+00 : f32
      %45 = vector.broadcast %cst_26 : f32 to vector<8x32xf32>
      %46 = arith.subf %45, %39 : vector<8x32xf32>
      %47 = arith.mulf %46, %44 : vector<8x32xf32>
      %48 = arith.mulf %39, %18 : vector<8x32xf32>
      %49 = arith.addf %47, %48 : vector<8x32xf32>
      %c0_27 = arith.constant 0 : index
      %c0_28 = arith.constant 0 : index
      %50 = vector.load %arg6[%c0_27, %c0_28] : memref<32x96xf32, #tpu.memory_space<vmem>>, vector<32x96xf32>
      %cst_29 = arith.constant dense<0.000000e+00> : vector<8x96xf32>
      %51 = tpu.matmul %49, %50, %cst_29 {dimension_numbers = #tpu.dot_dimension_numbers<[1], [0], [0], [1], [0, 0, 1, 1], [], []>} : vector<8x32xf32>, vector<32x96xf32>, vector<8x96xf32> -> vector<8x96xf32>
      %52 = vector.broadcast %11 : vector<1x96xf32> to vector<8x96xf32>
      %53 = arith.addf %51, %52 : vector<8x96xf32>
      %c0_30 = arith.constant 0 : index
      %c0_31 = arith.constant 0 : index
      %54 = vector.load %arg8[%c0_30, %c0_31] : memref<32x96xf32, #tpu.memory_space<vmem>>, vector<32x96xf32>
      %cst_32 = arith.constant dense<0.000000e+00> : vector<8x96xf32>
      %55 = tpu.matmul %19, %54, %cst_32 {dimension_numbers = #tpu.dot_dimension_numbers<[1], [0], [0], [1], [0, 0, 1, 1], [], []>} : vector<8x32xf32>, vector<32x96xf32>, vector<8x96xf32> -> vector<8x96xf32>
      %56 = vector.broadcast %12 : vector<1x96xf32> to vector<8x96xf32>
      %57 = arith.addf %55, %56 : vector<8x96xf32>
      %58 = vector.extract_strided_slice %53 {offsets = [0, 0], sizes = [8, 32], strides = [1, 1]} : vector<8x96xf32> to vector<8x32xf32>
      %59 = vector.extract_strided_slice %57 {offsets = [0, 0], sizes = [8, 32], strides = [1, 1]} : vector<8x96xf32> to vector<8x32xf32>
      %60 = arith.addf %58, %59 : vector<8x32xf32>
      %61 = arith.negf %60 : vector<8x32xf32>
      %62 = math.exp %61 : vector<8x32xf32>
      %cst_33 = arith.constant 1.000000e+00 : f32
      %63 = vector.broadcast %cst_33 : f32 to vector<8x32xf32>
      %64 = arith.addf %63, %62 : vector<8x32xf32>
      %65 = arith.divf %63, %64 : vector<8x32xf32>
      %66 = vector.extract_strided_slice %53 {offsets = [0, 32], sizes = [8, 32], strides = [1, 1]} : vector<8x96xf32> to vector<8x32xf32>
      %67 = vector.extract_strided_slice %57 {offsets = [0, 32], sizes = [8, 32], strides = [1, 1]} : vector<8x96xf32> to vector<8x32xf32>
      %68 = arith.addf %66, %67 : vector<8x32xf32>
      %69 = arith.negf %68 : vector<8x32xf32>
      %70 = math.exp %69 : vector<8x32xf32>
      %cst_34 = arith.constant 1.000000e+00 : f32
      %71 = vector.broadcast %cst_34 : f32 to vector<8x32xf32>
      %72 = arith.addf %71, %70 : vector<8x32xf32>
      %73 = arith.divf %71, %72 : vector<8x32xf32>
      %74 = vector.extract_strided_slice %53 {offsets = [0, 64], sizes = [8, 32], strides = [1, 1]} : vector<8x96xf32> to vector<8x32xf32>
      %75 = vector.extract_strided_slice %57 {offsets = [0, 64], sizes = [8, 32], strides = [1, 1]} : vector<8x96xf32> to vector<8x32xf32>
      %76 = arith.mulf %65, %75 : vector<8x32xf32>
      %77 = arith.addf %74, %76 : vector<8x32xf32>
      %78 = math.tanh %77 : vector<8x32xf32>
      %cst_35 = arith.constant 1.000000e+00 : f32
      %79 = vector.broadcast %cst_35 : f32 to vector<8x32xf32>
      %80 = arith.subf %79, %73 : vector<8x32xf32>
      %81 = arith.mulf %80, %78 : vector<8x32xf32>
      %82 = arith.mulf %73, %19 : vector<8x32xf32>
      %83 = arith.addf %81, %82 : vector<8x32xf32>
      %c0_36 = arith.constant 0 : index
      %c0_37 = arith.constant 0 : index
      %84 = vector.load %arg12[%c0_36, %c0_37] : memref<8x32xf32, #tpu.memory_space<vmem>>, vector<8x32xf32>
      tpu.vector_store %arg12[%c0_36, %c0_37], %49 {strides = array<i32>} : memref<8x32xf32, #tpu.memory_space<vmem>>, vector<8x32xf32>,
      %c0_38 = arith.constant 0 : index
      %c0_39 = arith.constant 0 : index
      %85 = vector.load %arg13[%c0_38, %c0_39] : memref<8x32xf32, #tpu.memory_space<vmem>>, vector<8x32xf32>
      tpu.vector_store %arg13[%c0_38, %c0_39], %83 {strides = array<i32>} : memref<8x32xf32, #tpu.memory_space<vmem>>, vector<8x32xf32>,
      %86 = arith.addf %49, %83 : vector<8x32xf32>
      %87 = arith.index_cast %15 : i32 to index
      %c0_40 = arith.constant 0 : index
      %88 = vector.load %arg10[%87, %c0_40] : memref<32x32xf32, #tpu.memory_space<vmem>>, vector<8x32xf32>
      tpu.vector_store %arg10[%87, %c0_40], %86 {strides = array<i32>} : memref<32x32xf32, #tpu.memory_space<vmem>>, vector<8x32xf32>,
    }
    %c4_i32_15 = arith.constant 4 : i32
    return
  }
  func.func @transform_0(%arg0: i32) -> (i32, i32) {
    %c0_i32 = arith.constant 0 : i32
    %c0_i32_0 = arith.constant 0 : i32
    return %arg0, %c0_i32 : i32, i32
  }
  func.func @transform_1(%arg0: i32) -> (i32, i32) {
    %c0_i32 = arith.constant 0 : i32
    %c0_i32_0 = arith.constant 0 : i32
    %c0_i32_1 = arith.constant 0 : i32
    return %c0_i32, %c0_i32_0 : i32, i32
  }
  func.func @transform_2(%arg0: i32) -> (i32, i32) {
    %c0_i32 = arith.constant 0 : i32
    %c0_i32_0 = arith.constant 0 : i32
    %c0_i32_1 = arith.constant 0 : i32
    return %c0_i32, %c0_i32_0 : i32, i32
  }
  func.func @transform_3(%arg0: i32) -> (i32, i32) {
    %c0_i32 = arith.constant 0 : i32
    %c0_i32_0 = arith.constant 0 : i32
    %c0_i32_1 = arith.constant 0 : i32
    return %c0_i32, %c0_i32_0 : i32, i32
  }
  func.func @transform_4(%arg0: i32) -> (i32, i32) {
    %c0_i32 = arith.constant 0 : i32
    %c0_i32_0 = arith.constant 0 : i32
    %c0_i32_1 = arith.constant 0 : i32
    return %c0_i32, %c0_i32_0 : i32, i32
  }
  func.func @transform_5(%arg0: i32) -> (i32, i32) {
    %c0_i32 = arith.constant 0 : i32
    %c0_i32_0 = arith.constant 0 : i32
    %c0_i32_1 = arith.constant 0 : i32
    return %c0_i32, %c0_i32_0 : i32, i32
  }
  func.func @transform_6(%arg0: i32) -> (i32, i32) {
    %c0_i32 = arith.constant 0 : i32
    %c0_i32_0 = arith.constant 0 : i32
    %c0_i32_1 = arith.constant 0 : i32
    return %c0_i32, %c0_i32_0 : i32, i32
  }
  func.func @transform_7(%arg0: i32) -> (i32, i32) {
    %c0_i32 = arith.constant 0 : i32
    %c0_i32_0 = arith.constant 0 : i32
    %c0_i32_1 = arith.constant 0 : i32
    return %c0_i32, %c0_i32_0 : i32, i32
  }
  func.func @transform_8(%arg0: i32) -> (i32, i32) {
    %c0_i32 = arith.constant 0 : i32
    %c0_i32_0 = arith.constant 0 : i32
    %c0_i32_1 = arith.constant 0 : i32
    return %c0_i32, %c0_i32_0 : i32, i32
  }
  func.func @transform_9(%arg0: i32) -> (i32, i32) {
    %c0_i32 = arith.constant 0 : i32
    %c0_i32_0 = arith.constant 0 : i32
    return %arg0, %c0_i32 : i32, i32
  }
}

module attributes {stable_mosaic.version = 11 : i64} {
  func.func @head_kernel(%arg0: i32, %arg1: memref<32x32xf32, #tpu.memory_space<vmem>>, %arg2: memref<32x1xf32, #tpu.memory_space<vmem>>, %arg3: memref<1x32xf32, #tpu.memory_space<vmem>>, %arg4: memref<1x32xf32, #tpu.memory_space<vmem>>, %arg5: memref<32x128xf32, #tpu.memory_space<vmem>>, %arg6: memref<1x128xf32, #tpu.memory_space<vmem>>, %arg7: memref<32x128xf32, #tpu.memory_space<vmem>>) attributes {dimension_semantics = [#tpu.dimension_semantics<parallel>], iteration_bounds = array<i64: 2>, scalar_prefetch = 0 : i64, scratch_operands = 0 : i64, tpu.core_type = #tpu.core_type<tc>, window_params = [{transform_indices = @transform_0, window_bounds = array<i64: 32, 32>}, {transform_indices = @transform_1, window_bounds = array<i64: 32, 1>}, {pipeline_mode = #tpu.pipeline_mode<synchronous>, transform_indices = @transform_2, window_bounds = array<i64: 1, 32>}, {pipeline_mode = #tpu.pipeline_mode<synchronous>, transform_indices = @transform_3, window_bounds = array<i64: 1, 32>}, {pipeline_mode = #tpu.pipeline_mode<synchronous>, transform_indices = @transform_4, window_bounds = array<i64: 32, 128>}, {pipeline_mode = #tpu.pipeline_mode<synchronous>, transform_indices = @transform_5, window_bounds = array<i64: 1, 128>}, {transform_indices = @transform_6, window_bounds = array<i64: 32, 128>}]} {
    %c0 = arith.constant 0 : index
    %c0_0 = arith.constant 0 : index
    %0 = vector.load %arg1[%c0, %c0_0] : memref<32x32xf32, #tpu.memory_space<vmem>>, vector<32x32xf32>
    %c0_1 = arith.constant 0 : index
    %c0_2 = arith.constant 0 : index
    %1 = vector.load %arg2[%c0_1, %c0_2] : memref<32x1xf32, #tpu.memory_space<vmem>>, vector<32x1xf32>
    %2 = vector.broadcast %1 : vector<32x1xf32> to vector<32x32xf32>
    %3 = arith.mulf %0, %2 : vector<32x32xf32>
    %cst = arith.constant dense<0.000000e+00> : vector<32xf32>
    %4 = vector.multi_reduction <add>, %3, %cst [1] : vector<32x32xf32> to vector<32xf32>
    %5 = vector.shape_cast %4 : vector<32xf32> to vector<32x1xf32>
    %cst_3 = arith.constant 3.200000e+01 : f32
    %6 = vector.broadcast %cst_3 : f32 to vector<32x1xf32>
    %7 = arith.divf %5, %6 : vector<32x1xf32>
    %8 = vector.broadcast %7 : vector<32x1xf32> to vector<32x32xf32>
    %9 = arith.subf %3, %8 : vector<32x32xf32>
    %10 = arith.mulf %9, %9 : vector<32x32xf32>
    %cst_4 = arith.constant dense<0.000000e+00> : vector<32xf32>
    %11 = vector.multi_reduction <add>, %10, %cst_4 [1] : vector<32x32xf32> to vector<32xf32>
    %12 = vector.shape_cast %11 : vector<32xf32> to vector<32x1xf32>
    %cst_5 = arith.constant 3.200000e+01 : f32
    %13 = vector.broadcast %cst_5 : f32 to vector<32x1xf32>
    %14 = arith.divf %12, %13 : vector<32x1xf32>
    %cst_6 = arith.constant 9.99999974E-6 : f32
    %15 = vector.broadcast %cst_6 : f32 to vector<32x1xf32>
    %16 = arith.addf %14, %15 : vector<32x1xf32>
    %17 = math.rsqrt %16 : vector<32x1xf32>
    %18 = vector.broadcast %17 : vector<32x1xf32> to vector<32x32xf32>
    %19 = arith.mulf %9, %18 : vector<32x32xf32>
    %c0_7 = arith.constant 0 : index
    %c0_8 = arith.constant 0 : index
    %20 = vector.load %arg3[%c0_7, %c0_8] : memref<1x32xf32, #tpu.memory_space<vmem>>, vector<1x32xf32>
    %21 = vector.broadcast %20 : vector<1x32xf32> to vector<32x32xf32>
    %22 = arith.mulf %19, %21 : vector<32x32xf32>
    %c0_9 = arith.constant 0 : index
    %c0_10 = arith.constant 0 : index
    %23 = vector.load %arg4[%c0_9, %c0_10] : memref<1x32xf32, #tpu.memory_space<vmem>>, vector<1x32xf32>
    %24 = vector.broadcast %23 : vector<1x32xf32> to vector<32x32xf32>
    %25 = arith.addf %22, %24 : vector<32x32xf32>
    %c0_11 = arith.constant 0 : index
    %c0_12 = arith.constant 0 : index
    %26 = vector.load %arg5[%c0_11, %c0_12] : memref<32x128xf32, #tpu.memory_space<vmem>>, vector<32x128xf32>
    %cst_13 = arith.constant dense<0.000000e+00> : vector<32x128xf32>
    %27 = tpu.matmul %25, %26, %cst_13 {dimension_numbers = #tpu.dot_dimension_numbers<[1], [0], [0], [1], [0, 0, 1, 1], [], []>} : vector<32x32xf32>, vector<32x128xf32>, vector<32x128xf32> -> vector<32x128xf32>
    %c0_14 = arith.constant 0 : index
    %c0_15 = arith.constant 0 : index
    %28 = vector.load %arg6[%c0_14, %c0_15] : memref<1x128xf32, #tpu.memory_space<vmem>>, vector<1x128xf32>
    %29 = vector.broadcast %28 : vector<1x128xf32> to vector<32x128xf32>
    %30 = arith.addf %27, %29 : vector<32x128xf32>
    %cst_16 = arith.constant dense<0xFF800000> : vector<32xf32>
    %31 = vector.multi_reduction <maximumf>, %30, %cst_16 [1] : vector<32x128xf32> to vector<32xf32>
    %32 = vector.shape_cast %31 : vector<32xf32> to vector<32x1xf32>
    %33 = vector.broadcast %32 : vector<32x1xf32> to vector<32x128xf32>
    %34 = arith.subf %30, %33 : vector<32x128xf32>
    %35 = math.exp %34 : vector<32x128xf32>
    %cst_17 = arith.constant dense<0.000000e+00> : vector<32xf32>
    %36 = vector.multi_reduction <add>, %35, %cst_17 [1] : vector<32x128xf32> to vector<32xf32>
    %37 = vector.shape_cast %36 : vector<32xf32> to vector<32x1xf32>
    %38 = math.log %37 : vector<32x1xf32>
    %39 = arith.addf %32, %38 : vector<32x1xf32>
    %40 = vector.broadcast %39 : vector<32x1xf32> to vector<32x128xf32>
    %41 = arith.subf %30, %40 : vector<32x128xf32>
    %c0_18 = arith.constant 0 : index
    %c0_19 = arith.constant 0 : index
    %42 = vector.load %arg7[%c0_18, %c0_19] : memref<32x128xf32, #tpu.memory_space<vmem>>, vector<32x128xf32>
    tpu.vector_store %arg7[%c0_18, %c0_19], %41 {strides = array<i32>} : memref<32x128xf32, #tpu.memory_space<vmem>>, vector<32x128xf32>,
    return
  }
  func.func @transform_0(%arg0: i32) -> (i32, i32) {
    %c0_i32 = arith.constant 0 : i32
    %c0_i32_0 = arith.constant 0 : i32
    return %arg0, %c0_i32 : i32, i32
  }
  func.func @transform_1(%arg0: i32) -> (i32, i32) {
    %c0_i32 = arith.constant 0 : i32
    %c0_i32_0 = arith.constant 0 : i32
    return %arg0, %c0_i32 : i32, i32
  }
  func.func @transform_2(%arg0: i32) -> (i32, i32) {
    %c0_i32 = arith.constant 0 : i32
    %c0_i32_0 = arith.constant 0 : i32
    %c0_i32_1 = arith.constant 0 : i32
    return %c0_i32, %c0_i32_0 : i32, i32
  }
  func.func @transform_3(%arg0: i32) -> (i32, i32) {
    %c0_i32 = arith.constant 0 : i32
    %c0_i32_0 = arith.constant 0 : i32
    %c0_i32_1 = arith.constant 0 : i32
    return %c0_i32, %c0_i32_0 : i32, i32
  }
  func.func @transform_4(%arg0: i32) -> (i32, i32) {
    %c0_i32 = arith.constant 0 : i32
    %c0_i32_0 = arith.constant 0 : i32
    %c0_i32_1 = arith.constant 0 : i32
    return %c0_i32, %c0_i32_0 : i32, i32
  }
  func.func @transform_5(%arg0: i32) -> (i32, i32) {
    %c0_i32 = arith.constant 0 : i32
    %c0_i32_0 = arith.constant 0 : i32
    %c0_i32_1 = arith.constant 0 : i32
    return %c0_i32, %c0_i32_0 : i32, i32
  }
  func.func @transform_6(%arg0: i32) -> (i32, i32) {
    %c0_i32 = arith.constant 0 : i32
    %c0_i32_0 = arith.constant 0 : i32
    return %arg0, %c0_i32 : i32, i32
  }
}

</mosaic_0001>

<llo_original>
// kernel: classic_language_model.3
$region0: #{classic_language_model.3}
  #allocation0 [shape = 'u32[]', space=smem, size = 0x4, offset = 0x4, fixed_abs, tag = 'smem constant byte address 0x4 - core index']
  #allocation1 [shape = 'u32[144,128]{1,0:T(1,128)}', space=vmem, size = 0x12000, scoped, tag = 'internal scratch']
  %s0 = inlined_call_operand.hbm [shape: f32[64,32], index: 0, kind: input, shape index: {}]
  %s1 = inlined_call_operand.hbm [shape: f32[64,1], index: 1, kind: input, shape index: {}]
  %s2 = inlined_call_operand.hbm [shape: f32[1,32], index: 2, kind: input, shape index: {}]
  %s3 = inlined_call_operand.hbm [shape: f32[1,32], index: 3, kind: input, shape index: {}]
  %s4 = inlined_call_operand.hbm [shape: f32[32,128], index: 4, kind: input, shape index: {}]
  %s5 = inlined_call_operand.hbm [shape: f32[1,128], index: 5, kind: input, shape index: {}]
  %s6 = inlined_call_operand.hbm [shape: f32[64,128], index: 6, kind: output, shape index: {}]
  %s7 = sld [smem:[#allocation0]]
  $region81: #{classic_language_model.3} parent=0
    _
  %s9 = ssub.s32 1, %s7
  %s10 = scalar_select 0, %s9, %s7
  $region1: #{classic_language_model.3} parent=0
    #allocation2 [shape = 'u8[32768]{0}', space=vmem, size = 0x8000, scoped, tag = 'input window, operand 0']
    #allocation3 [shape = 's32[2]{0}', space=sflag, size = 0x8, scoped, tag = 'scoped memory for classic_language_model.3']
    #allocation4 [shape = 's32[2]{0}', space=sflag, size = 0x8, scoped, tag = 'scoped memory for classic_language_model.3']
    #allocation5 [shape = 'u8[32768]{0}', space=vmem, size = 0x8000, scoped, tag = 'input window, operand 1']
    #allocation6 [shape = 's32[2]{0}', space=sflag, size = 0x8, scoped, tag = 'scoped memory for classic_language_model.3']
    #allocation7 [shape = 'u8[512]{0}', space=vmem, size = 0x400, scoped, tag = 'input window, operand 2, single buffered']
    #allocation8 [shape = 'u8[512]{0}', space=vmem, size = 0x400, scoped, tag = 'input window, operand 3, single buffered']
    #allocation9 [shape = 's32[1]{0}', space=sflag, size = 0x4, scoped, tag = 'scoped memory for classic_language_model.3']
    #allocation10 [shape = 'u8[16384]{0}', space=vmem, size = 0x4000, scoped, tag = 'input window, operand 4, single buffered']
    #allocation11 [shape = 'u8[512]{0}', space=vmem, size = 0x400, scoped, tag = 'input window, operand 5, single buffered']
    #allocation12 [shape = 's32[1]{0}', space=sflag, size = 0x4, scoped, tag = 'scoped memory for classic_language_model.3']
    #allocation13 [shape = 'u8[32768]{0}', space=vmem, size = 0x8000, scoped, tag = 'output window, operand 0']
    %11 = vsyncpa [#allocation3], 0
    %s12 = scalar_lea.sflag [#allocation3], 1
    %13 = vsyncpa %s12, 0
    %14 = vsyncpa [#allocation6], 0
    %s15 = scalar_lea.sflag [#allocation6], 1
    %16 = vsyncpa %s15, 0
    %17 = vsyncpa [#allocation9], 0
    %18 = vsyncpa [#allocation12], 0
    %19 = vsyncpa [#allocation4], 0
    %s20 = scalar_lea.sflag [#allocation4], 1
    %21 = vsyncpa %s20, 0
    loop: start=0, step=1, limit=4
    $region2: #{classic_language_model.3} parent=1 // loop_pre_header
      _
    $region3: #{classic_language_model.3} parent=1 // loop_header
      %s23 = sphi 0, %s27
      %p24 = scmp.ge.s32.totalorder %s23, 4
      %s33 = sphi 0, %s35
      %s36 = sphi 0, %s33
      %s37 = sphi 0, %s36
      %s53 = sphi 0, %s37
      %s59 = sphi 0, %s61
      %s62 = sphi 0, %s59
      %s63 = sphi 0, %s62
      %s79 = sphi 0, %s63
      %s83 = sphi 0, %s83
      %s85 = sphi 0, %s83
      %s86 = sphi 0, %s85
      %s100 = sphi 0, %s86
      %s104 = sphi 0, %s104
      %s106 = sphi 0, %s104
      %s107 = sphi 0, %s106
      %s121 = sphi 0, %s107
      %s125 = sphi 0, %s125
      %s127 = sphi 0, %s125
      %s128 = sphi 0, %s127
      %s142 = sphi 0, %s128
      %s146 = sphi 0, %s146
      %s148 = sphi 0, %s146
      %s149 = sphi 0, %s148
      %s163 = sphi 0, %s149
      %s169 = sphi 0, %s171
      %s172 = sphi 0, %s169
      %s173 = sphi 0, %s172
      %s189 = sphi 0, %s173
    $region4: #{classic_language_model.3} parent=1 // loop_header_branch
      %26 = sbr.rel (%p24) target = $region8
    $region5: #{classic_language_model.3} parent=1 // loop_body
      %s28 = ssub.s32 %s23, 1
      %s29 = ssub.s32 %s23, 2
      %s30 = sadd.s32 %s23, 1
      %s31 = ssub.s32 %s23, %s30
      %p32 = scmp.eq.s32.totalorder %s31, 0
      %s34 = sadd.s32 %s33, 1
      %s35 = scalar_select %p32, %s33, %s34
      %p38 = pneg %p32
      %p39 = scmp.eq.s32.totalorder %s23, 1
      %p40 = por %p38, %p39
      %p41 = scmp.ne.s32.totalorder %s33, %s36
      %p42 = scmp.eq.s32.totalorder %s23, 0
      %p43 = por %p41, %p42
      %p44 = scmp.ne.s32.totalorder %s33, %s36
      %p45 = scmp.eq.s32.totalorder %s28, 1
      %p46 = por %p44, %p45
      %p47 = scmp.ne.s32.totalorder %s36, %s37
      %p48 = scmp.eq.s32.totalorder %s28, 0
      %p49 = por %p47, %p48
      %p50 = scmp.ne.s32.totalorder %s36, %s37
      %p51 = scmp.eq.s32.totalorder %s29, 1
      %p52 = por %p50, %p51
      %p54 = scmp.ne.s32.totalorder %s37, %s53
      %p55 = scmp.eq.s32.totalorder %s29, 0
      %p56 = por %p54, %p55
      %s57 = ssub.s32 %s23, %s30
      %p58 = scmp.eq.s32.totalorder %s57, 0
      %s60 = sadd.s32 %s59, 1
      %s61 = scalar_select %p58, %s59, %s60
      %p64 = pneg %p58
      %p65 = scmp.eq.s32.totalorder %s23, 1
      %p66 = por %p64, %p65
      %p67 = scmp.ne.s32.totalorder %s59, %s62
      %p68 = scmp.eq.s32.totalorder %s23, 0
      %p69 = por %p67, %p68
      %p70 = scmp.ne.s32.totalorder %s59, %s62
      %p71 = scmp.eq.s32.totalorder %s28, 1
      %p72 = por %p70, %p71
      %p73 = scmp.ne.s32.totalorder %s62, %s63
      %p74 = scmp.eq.s32.totalorder %s28, 0
      %p75 = por %p73, %p74
      %p76 = scmp.ne.s32.totalorder %s62, %s63
      %p77 = scmp.eq.s32.totalorder %s29, 1
      %p78 = por %p76, %p77
      %p80 = scmp.ne.s32.totalorder %s63, %s79
      %p81 = scmp.eq.s32.totalorder %s29, 0
      %p82 = por %p80, %p81
      %s84 = sadd.s32 %s83, 1
      %p87 = scmp.eq.s32.totalorder %s23, 1
      %p88 = scmp.ne.s32.totalorder %s83, %s85
      %p89 = scmp.eq.s32.totalorder %s23, 0
      %p90 = por %p88, %p89
      %p91 = scmp.ne.s32.totalorder %s83, %s85
      %p92 = scmp.eq.s32.totalorder %s28, 1
      %p93 = por %p91, %p92
      %p94 = scmp.ne.s32.totalorder %s85, %s86
      %p95 = scmp.eq.s32.totalorder %s28, 0
      %p96 = por %p94, %p95
      %p97 = scmp.ne.s32.totalorder %s85, %s86
      %p98 = scmp.eq.s32.totalorder %s29, 1
      %p99 = por %p97, %p98
      %p101 = scmp.ne.s32.totalorder %s86, %s100
      %p102 = scmp.eq.s32.totalorder %s29, 0
      %p103 = por %p101, %p102
      %s105 = sadd.s32 %s104, 1
      %p108 = scmp.eq.s32.totalorder %s23, 1
      %p109 = scmp.ne.s32.totalorder %s104, %s106
      %p110 = scmp.eq.s32.totalorder %s23, 0
      %p111 = por %p109, %p110
      %p112 = scmp.ne.s32.totalorder %s104, %s106
      %p113 = scmp.eq.s32.totalorder %s28, 1
      %p114 = por %p112, %p113
      %p115 = scmp.ne.s32.totalorder %s106, %s107
      %p116 = scmp.eq.s32.totalorder %s28, 0
      %p117 = por %p115, %p116
      %p118 = scmp.ne.s32.totalorder %s106, %s107
      %p119 = scmp.eq.s32.totalorder %s29, 1
      %p120 = por %p118, %p119
      %p122 = scmp.ne.s32.totalorder %s107, %s121
      %p123 = scmp.eq.s32.totalorder %s29, 0
      %p124 = por %p122, %p123
      %s126 = sadd.s32 %s125, 1
      %p129 = scmp.eq.s32.totalorder %s23, 1
      %p130 = scmp.ne.s32.totalorder %s125, %s127
      %p131 = scmp.eq.s32.totalorder %s23, 0
      %p132 = por %p130, %p131
      %p133 = scmp.ne.s32.totalorder %s125, %s127
      %p134 = scmp.eq.s32.totalorder %s28, 1
      %p135 = por %p133, %p134
      %p136 = scmp.ne.s32.totalorder %s127, %s128
      %p137 = scmp.eq.s32.totalorder %s28, 0
      %p138 = por %p136, %p137
      %p139 = scmp.ne.s32.totalorder %s127, %s128
      %p140 = scmp.eq.s32.totalorder %s29, 1
      %p141 = por %p139, %p140
      %p143 = scmp.ne.s32.totalorder %s128, %s142
      %p144 = scmp.eq.s32.totalorder %s29, 0
      %p145 = por %p143, %p144
      %s147 = sadd.s32 %s146, 1
      %p150 = scmp.eq.s32.totalorder %s23, 1
      %p151 = scmp.ne.s32.totalorder %s146, %s148
      %p152 = scmp.eq.s32.totalorder %s23, 0
      %p153 = por %p151, %p152
      %p154 = scmp.ne.s32.totalorder %s146, %s148
      %p155 = scmp.eq.s32.totalorder %s28, 1
      %p156 = por %p154, %p155
      %p157 = scmp.ne.s32.totalorder %s148, %s149
      %p158 = scmp.eq.s32.totalorder %s28, 0
      %p159 = por %p157, %p158
      %p160 = scmp.ne.s32.totalorder %s148, %s149
      %p161 = scmp.eq.s32.totalorder %s29, 1
      %p162 = por %p160, %p161
      %p164 = scmp.ne.s32.totalorder %s149, %s163
      %p165 = scmp.eq.s32.totalorder %s29, 0
      %p166 = por %p164, %p165
      %s167 = ssub.s32 %s23, %s30
      %p168 = scmp.eq.s32.totalorder %s167, 0
      %s170 = sadd.s32 %s169, 1
      %s171 = scalar_select %p168, %s169, %s170
      %p174 = pneg %p168
      %p175 = scmp.eq.s32.totalorder %s23, 1
      %p176 = por %p174, %p175
      %p177 = scmp.ne.s32.totalorder %s169, %s172
      %p178 = scmp.eq.s32.totalorder %s23, 0
      %p179 = por %p177, %p178
      %p180 = scmp.ne.s32.totalorder %s169, %s172
      %p181 = scmp.eq.s32.totalorder %s28, 1
      %p182 = por %p180, %p181
      %p183 = scmp.ne.s32.totalorder %s172, %s173
      %p184 = scmp.eq.s32.totalorder %s28, 0
      %p185 = por %p183, %p184
      %p186 = scmp.ne.s32.totalorder %s172, %s173
      %p187 = scmp.eq.s32.totalorder %s29, 1
      %p188 = por %p186, %p187
      %p190 = scmp.ne.s32.totalorder %s173, %s189
      %p191 = scmp.eq.s32.totalorder %s29, 0
      %p192 = por %p190, %p191
      %p193 = scmp.le.s32.totalorder 1, %s23
      %p194 = scmp.lt.s32.totalorder %s23, 3
      %p195 = pnand %p193, %p194
      %p196 = pneg %p195
      // Predicated region
      $region9: #{classic_language_model.3} parent=5 // pred_check
        _
      $region10: #{classic_language_model.3} parent=5 // pred_check_branch
        %198 = sbr.rel (%p195) target = $region12
      $region11: #{classic_language_model.3} parent=5 // pred_region
        %s199 = ssub.s32 %s23, 1
        // Predicated region
        $region13: #{classic_language_model.3} parent=11 // pred_check
          %p200 = pneg %p96
        $region14: #{classic_language_model.3} parent=11 // pred_check_branch
          %202 = sbr.rel (%p200) target = $region16
        $region15: #{classic_language_model.3} parent=11 // pred_region
          %s204 = ssub.s32 16, 16
          %205 = vsyncadd [#allocation6], %s204
          %s207 = sshll.u32 [#allocation7], 4
          %s208 = int_to_ptr.vmem [resolvable:$true] %s207
          %210 = dma.hbm_to_vmem [thread:$0]  %s2, 16, %s208, [#allocation6]
        $region16: #{classic_language_model.3} parent=11 // pred_fallthru
          _
        // Predicated region
        $region17: #{classic_language_model.3} parent=11 // pred_check
          %p211 = pneg %p117
        $region18: #{classic_language_model.3} parent=11 // pred_check_branch
          %213 = sbr.rel (%p211) target = $region20
        $region19: #{classic_language_model.3} parent=11 // pred_region
          %s215 = ssub.s32 16, 16
          %216 = vsyncadd [#allocation9], %s215
          %s218 = sshll.u32 [#allocation8], 4
          %s219 = int_to_ptr.vmem [resolvable:$true] %s218
          %221 = dma.hbm_to_vmem [thread:$0]  %s3, 16, %s219, [#allocation9]
        $region20: #{classic_language_model.3} parent=11 // pred_fallthru
          _
        // Predicated region
        $region21: #{classic_language_model.3} parent=11 // pred_check
          %p222 = pneg %p138
        $region22: #{classic_language_model.3} parent=11 // pred_check_branch
          %224 = sbr.rel (%p222) target = $region24
        $region23: #{classic_language_model.3} parent=11 // pred_region
          %s226 = ssub.s32 512, 512
          %227 = vsyncadd [#allocation9], %s226
          %s228 = sshll.u32 [#allocation10], 4
          %s229 = int_to_ptr.vmem [resolvable:$true] %s228
          %234 = dma.hbm_to_vmem [thread:$0]  %s4, 512, %s229, [#allocation9], 128, 128, 8
        $region24: #{classic_language_model.3} parent=11 // pred_fallthru
          _
        // Predicated region
        $region25: #{classic_language_model.3} parent=11 // pred_check
          %p235 = pneg %p159
        $region26: #{classic_language_model.3} parent=11 // pred_check_branch
          %237 = sbr.rel (%p235) target = $region28
        $region27: #{classic_language_model.3} parent=11 // pred_region
          %s239 = ssub.s32 16, 16
          %240 = vsyncadd [#allocation12], %s239
          %s242 = sshll.u32 [#allocation11], 4
          %s243 = int_to_ptr.vmem [resolvable:$true] %s242
          %245 = dma.hbm_to_vmem [thread:$0]  %s5, 16, %s243, [#allocation12]
        $region28: #{classic_language_model.3} parent=11 // pred_fallthru
          _
      $region12: #{classic_language_model.3} parent=5 // pred_fallthru
        _
      %p246 = scmp.lt.s32.totalorder %s23, 2
      // Predicated region
      $region29: #{classic_language_model.3} parent=5 // pred_check
        %p247 = pneg %p246
      $region30: #{classic_language_model.3} parent=5 // pred_check_branch
        %249 = sbr.rel (%p247) target = $region32
      $region31: #{classic_language_model.3} parent=5 // pred_region
        // Predicated region
        $region33: #{classic_language_model.3} parent=31 // pred_check
          %p250 = pneg %p43
        $region34: #{classic_language_model.3} parent=31 // pred_check_branch
          %252 = sbr.rel (%p250) target = $region36
        $region35: #{classic_language_model.3} parent=31 // pred_region
          %s253 = sand.u32 %s33, 1
          %s254 = scalar_lea.sflag [#allocation3], %s253
          %s255 = sand.u32 %s33, 1
          %s256 = smul.addr %s255, 32
          %s257 = scalar_lea.vmem [#allocation2], %s256
          %s258 = smul.u32 4, %s23
          %s260 = ssub.s32 512, 512
          %261 = vsyncadd %s254, %s260
          %s262 = smul.addr %s258, 128
          %s263 = scalar_lea.hbm %s0, %s262
          %s264 = sshll.u32 %s257, 4
          %s265 = int_to_ptr.vmem [resolvable:$true] %s264
          %270 = dma.hbm_to_vmem [thread:$0]  %s263, 512, %s265, %s254, 128, 128, 8
        $region36: #{classic_language_model.3} parent=31 // pred_fallthru
          _
        // Predicated region
        $region37: #{classic_language_model.3} parent=31 // pred_check
          %p271 = pneg %p69
        $region38: #{classic_language_model.3} parent=31 // pred_check_branch
          %273 = sbr.rel (%p271) target = $region40
        $region39: #{classic_language_model.3} parent=31 // pred_region
          %s274 = sand.u32 %s23, 1
          %s275 = scalar_lea.sflag [#allocation6], %s274
          %s276 = sand.u32 %s59, 1
          %s277 = smul.addr %s276, 32
          %s278 = scalar_lea.vmem [#allocation5], %s277
          %s279 = smul.u32 4, %s23
          %s281 = ssub.s32 512, 512
          %282 = vsyncadd %s275, %s281
          %s283 = smul.addr %s279, 128
          %s284 = scalar_lea.hbm %s1, %s283
          %s285 = sshll.u32 %s278, 4
          %s286 = int_to_ptr.vmem [resolvable:$true] %s285
          %291 = dma.hbm_to_vmem [thread:$0]  %s284, 512, %s286, %s275, 128, 128, 8
        $region40: #{classic_language_model.3} parent=31 // pred_fallthru
          _
      $region32: #{classic_language_model.3} parent=5 // pred_fallthru
        _
      %p292 = scmp.le.s32.totalorder 1, %s23
      %p293 = scmp.lt.s32.totalorder %s23, 3
      %p294 = pnand %p292, %p293
      %p295 = pneg %p294
      // Predicated region
      $region41: #{classic_language_model.3} parent=5 // pred_check
        _
      $region42: #{classic_language_model.3} parent=5 // pred_check_branch
        %297 = sbr.rel (%p294) target = $region44
      $region43: #{classic_language_model.3} parent=5 // pred_region
        %s298 = ssub.s32 %s23, 1
        %s299 = sand.u32 %s36, 1
        %s300 = scalar_lea.sflag [#allocation3], %s299
        %s301 = sand.u32 %s36, 1
        %s302 = smul.addr %s301, 32
        %s303 = scalar_lea.vmem [#allocation2], %s302
        // Predicated region
        $region45: #{classic_language_model.3} parent=43 // pred_check
          %p304 = pneg %p49
        $region46: #{classic_language_model.3} parent=43 // pred_check_branch
          %306 = sbr.rel (%p304) target = $region48
        $region47: #{classic_language_model.3} parent=43 // pred_region
          %307 = dma.done %s300, 512
        $region48: #{classic_language_model.3} parent=43 // pred_fallthru
          _
        %s308 = sand.u32 %s28, 1
        %s309 = scalar_lea.sflag [#allocation6], %s308
        %s310 = sand.u32 %s62, 1
        %s311 = smul.addr %s310, 32
        %s312 = scalar_lea.vmem [#allocation5], %s311
        // Predicated region
        $region49: #{classic_language_model.3} parent=43 // pred_check
          %p313 = pneg %p75
        $region50: #{classic_language_model.3} parent=43 // pred_check_branch
          %315 = sbr.rel (%p313) target = $region52
        $region51: #{classic_language_model.3} parent=43 // pred_region
          %316 = dma.done %s309, 512
        $region52: #{classic_language_model.3} parent=43 // pred_fallthru
          _
        // Predicated region
        $region53: #{classic_language_model.3} parent=43 // pred_check
          %p317 = pneg %p96
        $region54: #{classic_language_model.3} parent=43 // pred_check_branch
          %319 = sbr.rel (%p317) target = $region56
        $region55: #{classic_language_model.3} parent=43 // pred_region
          %320 = dma.done [#allocation6], 16
        $region56: #{classic_language_model.3} parent=43 // pred_fallthru
          _
        // Predicated region
        $region57: #{classic_language_model.3} parent=43 // pred_check
          %p321 = pneg %p117
        $region58: #{classic_language_model.3} parent=43 // pred_check_branch
          %323 = sbr.rel (%p321) target = $region60
        $region59: #{classic_language_model.3} parent=43 // pred_region
          %324 = dma.done [#allocation9], 16
        $region60: #{classic_language_model.3} parent=43 // pred_fallthru
          _
        // Predicated region
        $region61: #{classic_language_model.3} parent=43 // pred_check
          %p325 = pneg %p138
        $region62: #{classic_language_model.3} parent=43 // pred_check_branch
          %327 = sbr.rel (%p325) target = $region64
        $region63: #{classic_language_model.3} parent=43 // pred_region
          %328 = dma.done [#allocation9], 512
        $region64: #{classic_language_model.3} parent=43 // pred_fallthru
          _
        // Predicated region
        $region65: #{classic_language_model.3} parent=43 // pred_check
          %p329 = pneg %p159
        $region66: #{classic_language_model.3} parent=43 // pred_check_branch
          %331 = sbr.rel (%p329) target = $region68
        $region67: #{classic_language_model.3} parent=43 // pred_region
          %332 = dma.done [#allocation12], 16
        $region68: #{classic_language_model.3} parent=43 // pred_fallthru
          _
        %s333 = sand.u32 %s36, 1
        %s334 = scalar_lea.sflag [#allocation3], %s333
        %s335 = sand.u32 %s36, 1
        %s336 = smul.addr %s335, 32
        %s337 = scalar_lea.vmem [#allocation2], %s336
        %p338 = pneg %p49
        %p339 = pneg %p46
        %s340 = sand.u32 %s28, 1
        %s341 = scalar_lea.sflag [#allocation6], %s340
        %s342 = sand.u32 %s62, 1
        %s343 = smul.addr %s342, 32
        %s344 = scalar_lea.vmem [#allocation5], %s343
        %p345 = pneg %p75
        %p346 = pneg %p72
        %p347 = pneg %p96
        %p348 = pneg %p93
        %p349 = pneg %p117
        %p350 = pneg %p114
        %p351 = pneg %p138
        %p352 = pneg %p135
        %p353 = pneg %p159
        %p354 = pneg %p156
        %p355 = pneg %p185
        %p356 = pneg %p182
        %s357 = sand.u32 %s172, 1
        %s358 = scalar_lea.sflag [#allocation4], %s357
        %s359 = sand.u32 %s172, 1
        %s360 = smul.addr %s359, 32
        %s361 = scalar_lea.vmem [#allocation13], %s360
        %s362 = smul.u32 4, %s28
        %s363 = smul.u32 4, %s28
        %s364 = smul.u32 4, %s28
        %v365 = vld [vmem:[%s303] sm:$0xff]
        %v366 = vld [vmem:[%s303 + $0x8] sm:$0xff]
        %v367 = vld [vmem:[%s303 + $0x10] sm:$0xff]
        %v368 = vld [vmem:[%s303 + $0x18] sm:$0xff]
        %v369 = vld [vmem:[%s312] sm:$0xff]
        %v370 = vld [vmem:[%s312 + $0x8] sm:$0xff]
        %v371 = vld [vmem:[%s312 + $0x10] sm:$0xff]
        %v372 = vld [vmem:[%s312 + $0x18] sm:$0xff]
        %374 = vset.pattern.permute.xlu0 0
        %375 = vperm.xlu0 %374, %v369
        %v376 = vpop.permute.xlu0 %375
        %379 = vset.pattern.permute.xlu0 0
        %380 = vperm.xlu0 %379, %v370
        %v381 = vpop.permute.xlu0 %380
        %384 = vset.pattern.permute.xlu0 0
        %385 = vperm.xlu0 %384, %v371
        %v386 = vpop.permute.xlu0 %385
        %389 = vset.pattern.permute.xlu0 0
        %390 = vperm.xlu0 %389, %v372
        %v391 = vpop.permute.xlu0 %390
        %v393 = vmul.f32 %v365, %v376
        %v394 = vmul.f32 %v366, %v381
        %v395 = vmul.f32 %v367, %v386
        %v396 = vmul.f32 %v368, %v391
        %vm397 = vcmask 261120
        %v398 = vsel %vm397, %v393, 0.0
        %399 = vadd.xlane.f32.xlu0 %v398
        %v400 = vpop.xlane.xlu0 %399
        %v401 = vsel %vm397, %v394, 0.0
        %402 = vadd.xlane.f32.xlu0 %v401
        %v403 = vpop.xlane.xlu0 %402
        %v404 = vsel %vm397, %v395, 0.0
        %405 = vadd.xlane.f32.xlu0 %v404
        %v406 = vpop.xlane.xlu0 %405
        %v407 = vsel %vm397, %v396, 0.0
        %408 = vadd.xlane.f32.xlu0 %v407
        %v409 = vpop.xlane.xlu0 %408
        %v410 = vrcp.pop 32.0
        %v411 = vmul.f32 %v400, %v410
        %v412 = vmul.f32 %v403, %v410
        %v413 = vmul.f32 %v406, %v410
        %v414 = vmul.f32 %v409, %v410
        %v415 = vsub.f32 %v393, %v411
        %v416 = vsub.f32 %v394, %v412
        %v417 = vsub.f32 %v395, %v413
        %v418 = vsub.f32 %v396, %v414
        %v419 = vmul.f32 %v415, %v415
        %v420 = vmul.f32 %v416, %v416
        %v421 = vmul.f32 %v417, %v417
        %v422 = vmul.f32 %v418, %v418
        %v423 = vsel %vm397, %v419, 0.0
        %424 = vadd.xlane.f32.xlu0 %v423
        %v425 = vpop.xlane.xlu0 %424
        %v426 = vsel %vm397, %v420, 0.0
        %427 = vadd.xlane.f32.xlu0 %v426
        %v428 = vpop.xlane.xlu0 %427
        %v429 = vsel %vm397, %v421, 0.0
        %430 = vadd.xlane.f32.xlu0 %v429
        %v431 = vpop.xlane.xlu0 %430
        %v432 = vsel %vm397, %v422, 0.0
        %433 = vadd.xlane.f32.xlu0 %v432
        %v434 = vpop.xlane.xlu0 %433
        %v435 = vmul.f32 %v425, %v410
        %v436 = vmul.f32 %v428, %v410
        %v437 = vmul.f32 %v431, %v410
        %v438 = vmul.f32 %v434, %v410
        %v439 = vadd.f32 %v435, 1e-05
        %v440 = vadd.f32 %v436, 1e-05
        %v441 = vadd.f32 %v437, 1e-05
        %v442 = vadd.f32 %v438, 1e-05
        %v443 = vrsqrt.pop %v439
        %v444 = vrsqrt.pop %v440
        %v445 = vrsqrt.pop %v441
        %v446 = vrsqrt.pop %v442
        %v447 = vmul.f32 %v415, %v443
        %v448 = vmul.f32 %v416, %v444
        %v449 = vmul.f32 %v417, %v445
        %v450 = vmul.f32 %v418, %v446
        %v451 = vld [vmem:[#allocation7] sm:$0x1]
        %v453 = vlaneseq
        %v454 = vshrl.u32 %v453, 7
        %v455 = vsub.s32 0, %v454
        %v456 = vrot.slane %v451, %v455
        %v458 = vmul.f32 %v447, %v456
        %v459 = vmul.f32 %v448, %v456
        %v460 = vmul.f32 %v449, %v456
        %v461 = vmul.f32 %v450, %v456
        %v462 = vld [vmem:[#allocation8] sm:$0x1]
        %v464 = vlaneseq
        %v465 = vshrl.u32 %v464, 7
        %v466 = vsub.s32 0, %v465
        %v467 = vrot.slane %v462, %v466
        %v469 = vadd.f32 %v458, %v467
        %v470 = vadd.f32 %v459, %v467
        %v471 = vadd.f32 %v460, %v467
        %v472 = vadd.f32 %v461, %v467
        %v473 = vld [vmem:[#allocation10] sm:$0xff]
        %v474 = vld [vmem:[#allocation10 + $0x8] sm:$0xff]
        %v475 = vld [vmem:[#allocation10 + $0x10] sm:$0xff]
        %v476 = vld [vmem:[#allocation10 + $0x18] sm:$0xff]
        %v477 = vld [vmem:[#allocation11] sm:$0x1]
        %v479 = vlaneseq
        %v480 = vshrl.u32 %v479, 7
        %v481 = vsub.s32 0, %v480
        %v482 = vrot.slane %v477, %v481
        %v485 = vsel %vm397, %v469, 0
        %v488 = vsel %vm397, %v470, 0
        %v491 = vsel %vm397, %v471, 0
        %v494 = vsel %vm397, %v472, 0
        %496 = vmatprep.subr.mxu0 0.0
        %497 = vmatpush1.msra.mxu0 %v473
        %498 = vmatprep.subr.mxu0 0.0
        %499 = vmatpush1.msra.mxu0 %v474
        %500 = vmatprep.subr.mxu0 0.0
        %501 = vmatpush1.msra.mxu0 %v475
        %502 = vmatprep.subr.mxu0 0.0
        %503 = vmatpush1.msra.mxu0 %v476
        %504 = vmatprep.subr.mxu0 0.0
        %505 = vmatpush1.msra.mxu0 0.0
        %506 = vmatprep.subr.mxu0 0.0
        %507 = vmatpush1.msra.mxu0 0.0
        %508 = vmatprep.subr.mxu0 0.0
        %509 = vmatpush1.msra.mxu0 0.0
        %510 = vmatprep.subr.mxu0 0.0
        %511 = vmatpush1.msra.mxu0 0.0
        %512 = vmatprep.subr.mxu0 0.0
        %513 = vmatpush1.msra.mxu0 0.0
        %514 = vmatprep.subr.mxu0 0.0
        %515 = vmatpush1.msra.mxu0 0.0
        %516 = vmatprep.subr.mxu0 0.0
        %517 = vmatpush1.msra.mxu0 0.0
        %518 = vmatprep.subr.mxu0 0.0
        %519 = vmatpush1.msra.mxu0 0.0
        %520 = vmatprep.subr.mxu0 0.0
        %521 = vmatpush1.msra.mxu0 0.0
        %522 = vmatprep.subr.mxu0 0.0
        %523 = vmatpush1.msra.mxu0 0.0
        %524 = vmatprep.subr.mxu0 0.0
        %525 = vmatpush1.msra.mxu0 0.0
        %526 = vmatprep.subr.mxu0 0.0
        %527 = vmatpush1.msra.mxu0 0.0
        %528 = vmatprep.subr.mxu0 0.0
        %529 = vmatpush1.msra.mxu0 0.0
        %530 = vmatprep.subr.mxu0 0.0
        %531 = vmatpush1.msra.mxu0 0.0
        %532 = vmatprep.subr.mxu0 0.0
        %533 = vmatpush1.msra.mxu0 0.0
        %534 = vmatprep.subr.mxu0 0.0
        %535 = vmatpush1.msra.mxu0 0.0
        %536 = vmatprep.subr.mxu0 0.0
        %537 = vmatpush1.msra.mxu0 0.0
        %538 = vmatprep.subr.mxu0 0.0
        %539 = vmatpush1.msra.mxu0 0.0
        %540 = vmatprep.subr.mxu0 0.0
        %541 = vmatpush1.msra.mxu0 0.0
        %542 = vmatprep.subr.mxu0 0.0
        %543 = vmatpush1.msra.mxu0 0.0
        %544 = vmatprep.subr.mxu0 0.0
        %545 = vmatpush1.msra.mxu0 0.0
        %546 = vmatprep.subr.mxu0 0.0
        %547 = vmatpush1.msra.mxu0 0.0
        %548 = vmatprep.subr.mxu0 0.0
        %549 = vmatpush1.msra.mxu0 0.0
        %550 = vmatprep.subr.mxu0 0.0
        %551 = vmatpush1.msra.mxu0 0.0
        %552 = vmatprep.subr.mxu0 0.0
        %553 = vmatpush1.msra.mxu0 0.0
        %554 = vmatprep.subr.mxu0 0.0
        %555 = vmatpush1.msra.mxu0 0.0
        %556 = vmatprep.subr.mxu0 0.0
        %557 = vmatpush1.msra.mxu0 0.0
        %558 = vmatprep.subr.mxu0 0.0
        %559 = vmatpush1.msra.mxu0 0.0
        %560 = vmatprep.mubr.f32.mxu0 0.0
        %561 = vmatmul.mubr.f32.gmra.mrb[0].mxu0 %v485
        %v562 = vpop.f32.mrb[0].mxu0
        %v563 = vadd.f32 %v482, %v562
        %v564 = vpop.f32.mrb[0].mxu0
        %565 = vmatprep.mubr.f32.mxu0 0.0
        %566 = vmatmul.mubr.f32.gmra.mrb[0].mxu0 %v488
        %v567 = vpop.f32.mrb[0].mxu0
        %v568 = vadd.f32 %v482, %v567
        %v569 = vpop.f32.mrb[0].mxu0
        %570 = vmatprep.mubr.f32.mxu0 0.0
        %571 = vmatmul.mubr.f32.gmra.mrb[0].mxu0 %v491
        %v572 = vpop.f32.mrb[0].mxu0
        %v573 = vadd.f32 %v482, %v572
        %v574 = vpop.f32.mrb[0].mxu0
        %575 = vmatprep.mubr.f32.mxu0 0.0
        %576 = vmatmul.mubr.f32.gmra.mrb[0].mxu0 %v494
        %v577 = vpop.f32.mrb[0].mxu0
        %v578 = vadd.f32 %v482, %v577
        %v579 = vpop.f32.mrb[0].mxu0
        %580 = vdwg.mxu0
        %581 = vmax.xlane.f32.xlu0 %v563
        %v582 = vpop.xlane.xlu0 %581
        %583 = vmax.xlane.f32.xlu0 %v568
        %v584 = vpop.xlane.xlu0 %583
        %585 = vmax.xlane.f32.xlu0 %v573
        %v586 = vpop.xlane.xlu0 %585
        %587 = vmax.xlane.f32.xlu0 %v578
        %v588 = vpop.xlane.xlu0 %587
        %v589 = vsub.f32 %v563, %v582
        %v590 = vsub.f32 %v568, %v584
        %v591 = vsub.f32 %v573, %v586
        %v592 = vsub.f32 %v578, %v588
        %v593 = vmul.f32 %v589, 1.442695
        %v594 = vpow.pop %v593
        %v595 = vmul.f32 %v590, 1.442695
        %v596 = vpow.pop %v595
        %v597 = vmul.f32 %v591, 1.442695
        %v598 = vpow.pop %v597
        %v599 = vmul.f32 %v592, 1.442695
        %v600 = vpow.pop %v599
        %601 = vadd.xlane.f32.xlu0 %v594
        %v602 = vpop.xlane.xlu0 %601
        %603 = vadd.xlane.f32.xlu0 %v596
        %v604 = vpop.xlane.xlu0 %603
        %605 = vadd.xlane.f32.xlu0 %v598
        %v606 = vpop.xlane.xlu0 %605
        %607 = vadd.xlane.f32.xlu0 %v600
        %v608 = vpop.xlane.xlu0 %607
        %v609 = vlog2.pop %v602
        %v610 = vmul.f32 %v609, 0.6931472
        %v611 = vlog2.pop %v604
        %v612 = vmul.f32 %v611, 0.6931472
        %v613 = vlog2.pop %v606
        %v614 = vmul.f32 %v613, 0.6931472
        %v615 = vlog2.pop %v608
        %v616 = vmul.f32 %v615, 0.6931472
        %v617 = vadd.f32 %v582, %v610
        %v618 = vadd.f32 %v584, %v612
        %v619 = vadd.f32 %v586, %v614
        %v620 = vadd.f32 %v588, %v616
        %v621 = vsub.f32 %v563, %v617
        %v622 = vsub.f32 %v568, %v618
        %v623 = vsub.f32 %v573, %v619
        %v624 = vsub.f32 %v578, %v620
        %625 = vst [vmem:[%s361] sm:$0xff] %v621
        %626 = vst [vmem:[%s361 + $0x8] sm:$0xff] %v622
        %627 = vst [vmem:[%s361 + $0x10] sm:$0xff] %v623
        %628 = vst [vmem:[%s361 + $0x18] sm:$0xff] %v624
        %s629 = sand.u32 %s172, 1
        %s630 = scalar_lea.sflag [#allocation4], %s629
        %s631 = sand.u32 %s172, 1
        %s632 = smul.addr %s631, 32
        %s633 = scalar_lea.vmem [#allocation13], %s632
        // Predicated region
        $region69: #{classic_language_model.3} parent=43 // pred_check
          %p634 = pneg %p182
        $region70: #{classic_language_model.3} parent=43 // pred_check_branch
          %636 = sbr.rel (%p634) target = $region72
        $region71: #{classic_language_model.3} parent=43 // pred_region
          %s637 = smul.u32 4, %s28
          %s639 = ssub.s32 512, 512
          %640 = vsyncadd %s630, %s639
          %s641 = smul.addr %s637, 128
          %s642 = scalar_lea.hbm %s6, %s641
          %s643 = sshll.u32 %s633, 4
          %s644 = int_to_ptr.vmem [resolvable:$true] %s643
          %649 = dma.vmem_to_hbm [thread:$0]  %s644, 512, %s642, %s630, 128, 128, 8
        $region72: #{classic_language_model.3} parent=43 // pred_fallthru
          _
      $region44: #{classic_language_model.3} parent=5 // pred_fallthru
        _
      %p650 = scmp.le.s32.totalorder 2, %s23
      // Predicated region
      $region73: #{classic_language_model.3} parent=5 // pred_check
        %p651 = pneg %p650
      $region74: #{classic_language_model.3} parent=5 // pred_check_branch
        %653 = sbr.rel (%p651) target = $region76
      $region75: #{classic_language_model.3} parent=5 // pred_region
        %s654 = ssub.s32 %s23, 2
        // Predicated region
        $region77: #{classic_language_model.3} parent=75 // pred_check
          %p655 = pneg %p188
        $region78: #{classic_language_model.3} parent=75 // pred_check_branch
          %657 = sbr.rel (%p655) target = $region80
        $region79: #{classic_language_model.3} parent=75 // pred_region
          %s658 = sand.u32 %s173, 1
          %s659 = scalar_lea.sflag [#allocation4], %s658
          %s660 = sand.u32 %s173, 1
          %s661 = smul.addr %s660, 32
          %s662 = scalar_lea.vmem [#allocation13], %s661
          %663 = dma.done %s659, 512
        $region80: #{classic_language_model.3} parent=75 // pred_fallthru
          _
      $region76: #{classic_language_model.3} parent=5 // pred_fallthru
        _
    $region6: #{classic_language_model.3} parent=1 // loop_footer
      %s27 = sadd.s32 1, %s23
    $region7: #{classic_language_model.3} parent=1 // loop_footer_branch
      %22 = sbr.rel target = $region3
    $region8: #{classic_language_model.3} parent=1 // loop_exit
      _
    %664 = vsyncpa [#allocation3], 1
    %s665 = scalar_lea.sflag [#allocation3], 1
    %666 = vsyncpa %s665, 1
    %667 = vsyncpa [#allocation6], 1
    %s668 = scalar_lea.sflag [#allocation6], 1
    %669 = vsyncpa %s668, 1
    %670 = vsyncpa [#allocation9], 1
    %671 = vsyncpa [#allocation12], 1
    %672 = vsyncpa [#allocation4], 1
    %s673 = scalar_lea.sflag [#allocation4], 1
    %674 = vsyncpa %s673, 1

// kernel: classic_language_model.2
$region0: #{classic_language_model.2}
  #allocation0 [shape = 'u32[]', space=smem, size = 0x4, offset = 0x4, fixed_abs, tag = 'smem constant byte address 0x4 - core index']
  #allocation1 [shape = 'u32[144,128]{1,0:T(1,128)}', space=vmem, size = 0x12000, scoped, tag = 'internal scratch']
  #allocation2 [shape = 'f32[32,96]{1,0:T(8,128)}', space=vmem, size = 0x4000, scoped, tag = 'scratch operand']
  #allocation3 [shape = 'f32[8,32]{1,0:T(8,128)}', space=vmem, size = 0x1000, scoped, tag = 'scratch operand']
  #allocation4 [shape = 'f32[8,32]{1,0:T(8,128)}', space=vmem, size = 0x1000, scoped, tag = 'scratch operand']
  %s0 = inlined_call_operand.hbm [shape: f32[64,32], index: 0, kind: input, shape index: {}]
  %s1 = inlined_call_operand.hbm [shape: f32[32,96], index: 1, kind: input, shape index: {}]
  %s2 = inlined_call_operand.hbm [shape: f32[1,96], index: 2, kind: input, shape index: {}]
  %s3 = inlined_call_operand.hbm [shape: f32[32,96], index: 3, kind: input, shape index: {}]
  %s4 = inlined_call_operand.hbm [shape: f32[1,96], index: 4, kind: input, shape index: {}]
  %s5 = inlined_call_operand.hbm [shape: f32[32,96], index: 5, kind: input, shape index: {}]
  %s6 = inlined_call_operand.hbm [shape: f32[1,96], index: 6, kind: input, shape index: {}]
  %s7 = inlined_call_operand.hbm [shape: f32[32,96], index: 7, kind: input, shape index: {}]
  %s8 = inlined_call_operand.hbm [shape: f32[1,96], index: 8, kind: input, shape index: {}]
  %s9 = inlined_call_operand.hbm [shape: f32[64,32], index: 9, kind: output, shape index: {}]
  %s10 = sld [smem:[#allocation0]]
  $region116: #{classic_language_model.2} parent=0
    _
  %s12 = ssub.s32 1, %s10
  %s13 = scalar_select 0, %s12, %s10
  $region1: #{classic_language_model.2} parent=0
    #allocation5 [shape = 'u8[32768]{0}', space=vmem, size = 0x8000, scoped, tag = 'input window, operand 0']
    #allocation6 [shape = 's32[2]{0}', space=sflag, size = 0x8, scoped, tag = 'scoped memory for classic_language_model.2']
    #allocation7 [shape = 's32[2]{0}', space=sflag, size = 0x8, scoped, tag = 'scoped memory for classic_language_model.2']
    #allocation8 [shape = 'u8[16384]{0}', space=vmem, size = 0x4000, scoped, tag = 'input window, operand 1, single buffered']
    #allocation9 [shape = 's32[1]{0}', space=sflag, size = 0x4, scoped, tag = 'scoped memory for classic_language_model.2']
    #allocation10 [shape = 'u8[512]{0}', space=vmem, size = 0x400, scoped, tag = 'input window, operand 2, single buffered']
    #allocation11 [shape = 'u8[16384]{0}', space=vmem, size = 0x4000, scoped, tag = 'input window, operand 3, single buffered']
    #allocation12 [shape = 's32[1]{0}', space=sflag, size = 0x4, scoped, tag = 'scoped memory for classic_language_model.2']
    #allocation13 [shape = 'u8[512]{0}', space=vmem, size = 0x400, scoped, tag = 'input window, operand 4, single buffered']
    #allocation14 [shape = 'u8[16384]{0}', space=vmem, size = 0x4000, scoped, tag = 'input window, operand 5, single buffered']
    #allocation15 [shape = 's32[1]{0}', space=sflag, size = 0x4, scoped, tag = 'scoped memory for classic_language_model.2']
    #allocation16 [shape = 'u8[512]{0}', space=vmem, size = 0x400, scoped, tag = 'input window, operand 6, single buffered']
    #allocation17 [shape = 'u8[16384]{0}', space=vmem, size = 0x4000, scoped, tag = 'input window, operand 7, single buffered']
    #allocation18 [shape = 's32[1]{0}', space=sflag, size = 0x4, scoped, tag = 'scoped memory for classic_language_model.2']
    #allocation19 [shape = 'u8[512]{0}', space=vmem, size = 0x400, scoped, tag = 'input window, operand 8, single buffered']
    #allocation20 [shape = 'u8[32768]{0}', space=vmem, size = 0x8000, scoped, tag = 'output window, operand 0']
    %14 = vsyncpa [#allocation6], 0
    %s15 = scalar_lea.sflag [#allocation6], 1
    %16 = vsyncpa %s15, 0
    %17 = vsyncpa [#allocation9], 0
    %18 = vsyncpa [#allocation12], 0
    %19 = vsyncpa [#allocation15], 0
    %20 = vsyncpa [#allocation18], 0
    %21 = vsyncpa [#allocation7], 0
    %s22 = scalar_lea.sflag [#allocation7], 1
    %23 = vsyncpa %s22, 0
    loop: start=0, step=1, limit=4
    $region2: #{classic_language_model.2} parent=1 // loop_pre_header
      _
    $region3: #{classic_language_model.2} parent=1 // loop_header
      %s25 = sphi 0, %s29
      %p26 = scmp.ge.s32.totalorder %s25, 4
      %s35 = sphi 0, %s37
      %s38 = sphi 0, %s35
      %s39 = sphi 0, %s38
      %s55 = sphi 0, %s39
      %s59 = sphi 0, %s59
      %s61 = sphi 0, %s59
      %s62 = sphi 0, %s61
      %s76 = sphi 0, %s62
      %s80 = sphi 0, %s80
      %s82 = sphi 0, %s80
      %s83 = sphi 0, %s82
      %s97 = sphi 0, %s83
      %s101 = sphi 0, %s101
      %s103 = sphi 0, %s101
      %s104 = sphi 0, %s103
      %s118 = sphi 0, %s104
      %s122 = sphi 0, %s122
      %s124 = sphi 0, %s122
      %s125 = sphi 0, %s124
      %s139 = sphi 0, %s125
      %s143 = sphi 0, %s143
      %s145 = sphi 0, %s143
      %s146 = sphi 0, %s145
      %s160 = sphi 0, %s146
      %s164 = sphi 0, %s164
      %s166 = sphi 0, %s164
      %s167 = sphi 0, %s166
      %s181 = sphi 0, %s167
      %s185 = sphi 0, %s185
      %s187 = sphi 0, %s185
      %s188 = sphi 0, %s187
      %s202 = sphi 0, %s188
      %s206 = sphi 0, %s206
      %s208 = sphi 0, %s206
      %s209 = sphi 0, %s208
      %s223 = sphi 0, %s209
      %s229 = sphi 0, %s231
      %s232 = sphi 0, %s229
      %s233 = sphi 0, %s232
      %s249 = sphi 0, %s233
    $region4: #{classic_language_model.2} parent=1 // loop_header_branch
      %28 = sbr.rel (%p26) target = $region8
    $region5: #{classic_language_model.2} parent=1 // loop_body
      %s30 = ssub.s32 %s25, 1
      %s31 = ssub.s32 %s25, 2
      %s32 = sadd.s32 %s25, 1
      %s33 = ssub.s32 %s25, %s32
      %p34 = scmp.eq.s32.totalorder %s33, 0
      %s36 = sadd.s32 %s35, 1
      %s37 = scalar_select %p34, %s35, %s36
      %p40 = pneg %p34
      %p41 = scmp.eq.s32.totalorder %s25, 1
      %p42 = por %p40, %p41
      %p43 = scmp.ne.s32.totalorder %s35, %s38
      %p44 = scmp.eq.s32.totalorder %s25, 0
      %p45 = por %p43, %p44
      %p46 = scmp.ne.s32.totalorder %s35, %s38
      %p47 = scmp.eq.s32.totalorder %s30, 1
      %p48 = por %p46, %p47
      %p49 = scmp.ne.s32.totalorder %s38, %s39
      %p50 = scmp.eq.s32.totalorder %s30, 0
      %p51 = por %p49, %p50
      %p52 = scmp.ne.s32.totalorder %s38, %s39
      %p53 = scmp.eq.s32.totalorder %s31, 1
      %p54 = por %p52, %p53
      %p56 = scmp.ne.s32.totalorder %s39, %s55
      %p57 = scmp.eq.s32.totalorder %s31, 0
      %p58 = por %p56, %p57
      %s60 = sadd.s32 %s59, 1
      %p63 = scmp.eq.s32.totalorder %s25, 1
      %p64 = scmp.ne.s32.totalorder %s59, %s61
      %p65 = scmp.eq.s32.totalorder %s25, 0
      %p66 = por %p64, %p65
      %p67 = scmp.ne.s32.totalorder %s59, %s61
      %p68 = scmp.eq.s32.totalorder %s30, 1
      %p69 = por %p67, %p68
      %p70 = scmp.ne.s32.totalorder %s61, %s62
      %p71 = scmp.eq.s32.totalorder %s30, 0
      %p72 = por %p70, %p71
      %p73 = scmp.ne.s32.totalorder %s61, %s62
      %p74 = scmp.eq.s32.totalorder %s31, 1
      %p75 = por %p73, %p74
      %p77 = scmp.ne.s32.totalorder %s62, %s76
      %p78 = scmp.eq.s32.totalorder %s31, 0
      %p79 = por %p77, %p78
      %s81 = sadd.s32 %s80, 1
      %p84 = scmp.eq.s32.totalorder %s25, 1
      %p85 = scmp.ne.s32.totalorder %s80, %s82
      %p86 = scmp.eq.s32.totalorder %s25, 0
      %p87 = por %p85, %p86
      %p88 = scmp.ne.s32.totalorder %s80, %s82
      %p89 = scmp.eq.s32.totalorder %s30, 1
      %p90 = por %p88, %p89
      %p91 = scmp.ne.s32.totalorder %s82, %s83
      %p92 = scmp.eq.s32.totalorder %s30, 0
      %p93 = por %p91, %p92
      %p94 = scmp.ne.s32.totalorder %s82, %s83
      %p95 = scmp.eq.s32.totalorder %s31, 1
      %p96 = por %p94, %p95
      %p98 = scmp.ne.s32.totalorder %s83, %s97
      %p99 = scmp.eq.s32.totalorder %s31, 0
      %p100 = por %p98, %p99
      %s102 = sadd.s32 %s101, 1
      %p105 = scmp.eq.s32.totalorder %s25, 1
      %p106 = scmp.ne.s32.totalorder %s101, %s103
      %p107 = scmp.eq.s32.totalorder %s25, 0
      %p108 = por %p106, %p107
      %p109 = scmp.ne.s32.totalorder %s101, %s103
      %p110 = scmp.eq.s32.totalorder %s30, 1
      %p111 = por %p109, %p110
      %p112 = scmp.ne.s32.totalorder %s103, %s104
      %p113 = scmp.eq.s32.totalorder %s30, 0
      %p114 = por %p112, %p113
      %p115 = scmp.ne.s32.totalorder %s103, %s104
      %p116 = scmp.eq.s32.totalorder %s31, 1
      %p117 = por %p115, %p116
      %p119 = scmp.ne.s32.totalorder %s104, %s118
      %p120 = scmp.eq.s32.totalorder %s31, 0
      %p121 = por %p119, %p120
      %s123 = sadd.s32 %s122, 1
      %p126 = scmp.eq.s32.totalorder %s25, 1
      %p127 = scmp.ne.s32.totalorder %s122, %s124
      %p128 = scmp.eq.s32.totalorder %s25, 0
      %p129 = por %p127, %p128
      %p130 = scmp.ne.s32.totalorder %s122, %s124
      %p131 = scmp.eq.s32.totalorder %s30, 1
      %p132 = por %p130, %p131
      %p133 = scmp.ne.s32.totalorder %s124, %s125
      %p134 = scmp.eq.s32.totalorder %s30, 0
      %p135 = por %p133, %p134
      %p136 = scmp.ne.s32.totalorder %s124, %s125
      %p137 = scmp.eq.s32.totalorder %s31, 1
      %p138 = por %p136, %p137
      %p140 = scmp.ne.s32.totalorder %s125, %s139
      %p141 = scmp.eq.s32.totalorder %s31, 0
      %p142 = por %p140, %p141
      %s144 = sadd.s32 %s143, 1
      %p147 = scmp.eq.s32.totalorder %s25, 1
      %p148 = scmp.ne.s32.totalorder %s143, %s145
      %p149 = scmp.eq.s32.totalorder %s25, 0
      %p150 = por %p148, %p149
      %p151 = scmp.ne.s32.totalorder %s143, %s145
      %p152 = scmp.eq.s32.totalorder %s30, 1
      %p153 = por %p151, %p152
      %p154 = scmp.ne.s32.totalorder %s145, %s146
      %p155 = scmp.eq.s32.totalorder %s30, 0
      %p156 = por %p154, %p155
      %p157 = scmp.ne.s32.totalorder %s145, %s146
      %p158 = scmp.eq.s32.totalorder %s31, 1
      %p159 = por %p157, %p158
      %p161 = scmp.ne.s32.totalorder %s146, %s160
      %p162 = scmp.eq.s32.totalorder %s31, 0
      %p163 = por %p161, %p162
      %s165 = sadd.s32 %s164, 1
      %p168 = scmp.eq.s32.totalorder %s25, 1
      %p169 = scmp.ne.s32.totalorder %s164, %s166
      %p170 = scmp.eq.s32.totalorder %s25, 0
      %p171 = por %p169, %p170
      %p172 = scmp.ne.s32.totalorder %s164, %s166
      %p173 = scmp.eq.s32.totalorder %s30, 1
      %p174 = por %p172, %p173
      %p175 = scmp.ne.s32.totalorder %s166, %s167
      %p176 = scmp.eq.s32.totalorder %s30, 0
      %p177 = por %p175, %p176
      %p178 = scmp.ne.s32.totalorder %s166, %s167
      %p179 = scmp.eq.s32.totalorder %s31, 1
      %p180 = por %p178, %p179
      %p182 = scmp.ne.s32.totalorder %s167, %s181
      %p183 = scmp.eq.s32.totalorder %s31, 0
      %p184 = por %p182, %p183
      %s186 = sadd.s32 %s185, 1
      %p189 = scmp.eq.s32.totalorder %s25, 1
      %p190 = scmp.ne.s32.totalorder %s185, %s187
      %p191 = scmp.eq.s32.totalorder %s25, 0
      %p192 = por %p190, %p191
      %p193 = scmp.ne.s32.totalorder %s185, %s187
      %p194 = scmp.eq.s32.totalorder %s30, 1
      %p195 = por %p193, %p194
      %p196 = scmp.ne.s32.totalorder %s187, %s188
      %p197 = scmp.eq.s32.totalorder %s30, 0
      %p198 = por %p196, %p197
      %p199 = scmp.ne.s32.totalorder %s187, %s188
      %p200 = scmp.eq.s32.totalorder %s31, 1
      %p201 = por %p199, %p200
      %p203 = scmp.ne.s32.totalorder %s188, %s202
      %p204 = scmp.eq.s32.totalorder %s31, 0
      %p205 = por %p203, %p204
      %s207 = sadd.s32 %s206, 1
      %p210 = scmp.eq.s32.totalorder %s25, 1
      %p211 = scmp.ne.s32.totalorder %s206, %s208
      %p212 = scmp.eq.s32.totalorder %s25, 0
      %p213 = por %p211, %p212
      %p214 = scmp.ne.s32.totalorder %s206, %s208
      %p215 = scmp.eq.s32.totalorder %s30, 1
      %p216 = por %p214, %p215
      %p217 = scmp.ne.s32.totalorder %s208, %s209
      %p218 = scmp.eq.s32.totalorder %s30, 0
      %p219 = por %p217, %p218
      %p220 = scmp.ne.s32.totalorder %s208, %s209
      %p221 = scmp.eq.s32.totalorder %s31, 1
      %p222 = por %p220, %p221
      %p224 = scmp.ne.s32.totalorder %s209, %s223
      %p225 = scmp.eq.s32.totalorder %s31, 0
      %p226 = por %p224, %p225
      %s227 = ssub.s32 %s25, %s32
      %p228 = scmp.eq.s32.totalorder %s227, 0
      %s230 = sadd.s32 %s229, 1
      %s231 = scalar_select %p228, %s229, %s230
      %p234 = pneg %p228
      %p235 = scmp.eq.s32.totalorder %s25, 1
      %p236 = por %p234, %p235
      %p237 = scmp.ne.s32.totalorder %s229, %s232
      %p238 = scmp.eq.s32.totalorder %s25, 0
      %p239 = por %p237, %p238
      %p240 = scmp.ne.s32.totalorder %s229, %s232
      %p241 = scmp.eq.s32.totalorder %s30, 1
      %p242 = por %p240, %p241
      %p243 = scmp.ne.s32.totalorder %s232, %s233
      %p244 = scmp.eq.s32.totalorder %s30, 0
      %p245 = por %p243, %p244
      %p246 = scmp.ne.s32.totalorder %s232, %s233
      %p247 = scmp.eq.s32.totalorder %s31, 1
      %p248 = por %p246, %p247
      %p250 = scmp.ne.s32.totalorder %s233, %s249
      %p251 = scmp.eq.s32.totalorder %s31, 0
      %p252 = por %p250, %p251
      %p253 = scmp.le.s32.totalorder 1, %s25
      %p254 = scmp.lt.s32.totalorder %s25, 3
      %p255 = pnand %p253, %p254
      %p256 = pneg %p255
      // Predicated region
      $region9: #{classic_language_model.2} parent=5 // pred_check
        _
      $region10: #{classic_language_model.2} parent=5 // pred_check_branch
        %258 = sbr.rel (%p255) target = $region12
      $region11: #{classic_language_model.2} parent=5 // pred_region
        %s259 = ssub.s32 %s25, 1
        // Predicated region
        $region13: #{classic_language_model.2} parent=11 // pred_check
          %p260 = pneg %p72
        $region14: #{classic_language_model.2} parent=11 // pred_check_branch
          %262 = sbr.rel (%p260) target = $region16
        $region15: #{classic_language_model.2} parent=11 // pred_region
          %s264 = ssub.s32 512, 512
          %265 = vsyncadd [#allocation9], %s264
          %s266 = sshll.u32 [#allocation8], 4
          %s267 = int_to_ptr.vmem [resolvable:$true] %s266
          %272 = dma.hbm_to_vmem [thread:$0]  %s1, 512, %s267, [#allocation9], 128, 128, 8
        $region16: #{classic_language_model.2} parent=11 // pred_fallthru
          _
        // Predicated region
        $region17: #{classic_language_model.2} parent=11 // pred_check
          %p273 = pneg %p93
        $region18: #{classic_language_model.2} parent=11 // pred_check_branch
          %275 = sbr.rel (%p273) target = $region20
        $region19: #{classic_language_model.2} parent=11 // pred_region
          %s277 = ssub.s32 16, 16
          %278 = vsyncadd [#allocation9], %s277
          %s280 = sshll.u32 [#allocation10], 4
          %s281 = int_to_ptr.vmem [resolvable:$true] %s280
          %283 = dma.hbm_to_vmem [thread:$0]  %s2, 16, %s281, [#allocation9]
        $region20: #{classic_language_model.2} parent=11 // pred_fallthru
          _
        // Predicated region
        $region21: #{classic_language_model.2} parent=11 // pred_check
          %p284 = pneg %p114
        $region22: #{classic_language_model.2} parent=11 // pred_check_branch
          %286 = sbr.rel (%p284) target = $region24
        $region23: #{classic_language_model.2} parent=11 // pred_region
          %s288 = ssub.s32 512, 512
          %289 = vsyncadd [#allocation12], %s288
          %s290 = sshll.u32 [#allocation11], 4
          %s291 = int_to_ptr.vmem [resolvable:$true] %s290
          %296 = dma.hbm_to_vmem [thread:$0]  %s3, 512, %s291, [#allocation12], 128, 128, 8
        $region24: #{classic_language_model.2} parent=11 // pred_fallthru
          _
        // Predicated region
        $region25: #{classic_language_model.2} parent=11 // pred_check
          %p297 = pneg %p135
        $region26: #{classic_language_model.2} parent=11 // pred_check_branch
          %299 = sbr.rel (%p297) target = $region28
        $region27: #{classic_language_model.2} parent=11 // pred_region
          %s301 = ssub.s32 16, 16
          %302 = vsyncadd [#allocation12], %s301
          %s304 = sshll.u32 [#allocation13], 4
          %s305 = int_to_ptr.vmem [resolvable:$true] %s304
          %307 = dma.hbm_to_vmem [thread:$0]  %s4, 16, %s305, [#allocation12]
        $region28: #{classic_language_model.2} parent=11 // pred_fallthru
          _
        // Predicated region
        $region29: #{classic_language_model.2} parent=11 // pred_check
          %p308 = pneg %p156
        $region30: #{classic_language_model.2} parent=11 // pred_check_branch
          %310 = sbr.rel (%p308) target = $region32
        $region31: #{classic_language_model.2} parent=11 // pred_region
          %s312 = ssub.s32 512, 512
          %313 = vsyncadd [#allocation15], %s312
          %s314 = sshll.u32 [#allocation14], 4
          %s315 = int_to_ptr.vmem [resolvable:$true] %s314
          %320 = dma.hbm_to_vmem [thread:$0]  %s5, 512, %s315, [#allocation15], 128, 128, 8
        $region32: #{classic_language_model.2} parent=11 // pred_fallthru
          _
        // Predicated region
        $region33: #{classic_language_model.2} parent=11 // pred_check
          %p321 = pneg %p177
        $region34: #{classic_language_model.2} parent=11 // pred_check_branch
          %323 = sbr.rel (%p321) target = $region36
        $region35: #{classic_language_model.2} parent=11 // pred_region
          %s325 = ssub.s32 16, 16
          %326 = vsyncadd [#allocation15], %s325
          %s328 = sshll.u32 [#allocation16], 4
          %s329 = int_to_ptr.vmem [resolvable:$true] %s328
          %331 = dma.hbm_to_vmem [thread:$0]  %s6, 16, %s329, [#allocation15]
        $region36: #{classic_language_model.2} parent=11 // pred_fallthru
          _
        // Predicated region
        $region37: #{classic_language_model.2} parent=11 // pred_check
          %p332 = pneg %p198
        $region38: #{classic_language_model.2} parent=11 // pred_check_branch
          %334 = sbr.rel (%p332) target = $region40
        $region39: #{classic_language_model.2} parent=11 // pred_region
          %s336 = ssub.s32 512, 512
          %337 = vsyncadd [#allocation18], %s336
          %s338 = sshll.u32 [#allocation17], 4
          %s339 = int_to_ptr.vmem [resolvable:$true] %s338
          %344 = dma.hbm_to_vmem [thread:$0]  %s7, 512, %s339, [#allocation18], 128, 128, 8
        $region40: #{classic_language_model.2} parent=11 // pred_fallthru
          _
        // Predicated region
        $region41: #{classic_language_model.2} parent=11 // pred_check
          %p345 = pneg %p219
        $region42: #{classic_language_model.2} parent=11 // pred_check_branch
          %347 = sbr.rel (%p345) target = $region44
        $region43: #{classic_language_model.2} parent=11 // pred_region
          %s349 = ssub.s32 16, 16
          %350 = vsyncadd [#allocation18], %s349
          %s352 = sshll.u32 [#allocation19], 4
          %s353 = int_to_ptr.vmem [resolvable:$true] %s352
          %355 = dma.hbm_to_vmem [thread:$0]  %s8, 16, %s353, [#allocation18]
        $region44: #{classic_language_model.2} parent=11 // pred_fallthru
          _
      $region12: #{classic_language_model.2} parent=5 // pred_fallthru
        _
      %p356 = scmp.lt.s32.totalorder %s25, 2
      // Predicated region
      $region45: #{classic_language_model.2} parent=5 // pred_check
        %p357 = pneg %p356
      $region46: #{classic_language_model.2} parent=5 // pred_check_branch
        %359 = sbr.rel (%p357) target = $region48
      $region47: #{classic_language_model.2} parent=5 // pred_region
        // Predicated region
        $region49: #{classic_language_model.2} parent=47 // pred_check
          %p360 = pneg %p45
        $region50: #{classic_language_model.2} parent=47 // pred_check_branch
          %362 = sbr.rel (%p360) target = $region52
        $region51: #{classic_language_model.2} parent=47 // pred_region
          %s363 = sand.u32 %s35, 1
          %s364 = scalar_lea.sflag [#allocation6], %s363
          %s365 = sand.u32 %s35, 1
          %s366 = smul.addr %s365, 32
          %s367 = scalar_lea.vmem [#allocation5], %s366
          %s368 = smul.u32 4, %s25
          %s370 = ssub.s32 512, 512
          %371 = vsyncadd %s364, %s370
          %s372 = smul.addr %s368, 128
          %s373 = scalar_lea.hbm %s0, %s372
          %s374 = sshll.u32 %s367, 4
          %s375 = int_to_ptr.vmem [resolvable:$true] %s374
          %380 = dma.hbm_to_vmem [thread:$0]  %s373, 512, %s375, %s364, 128, 128, 8
        $region52: #{classic_language_model.2} parent=47 // pred_fallthru
          _
      $region48: #{classic_language_model.2} parent=5 // pred_fallthru
        _
      %p381 = scmp.le.s32.totalorder 1, %s25
      %p382 = scmp.lt.s32.totalorder %s25, 3
      %p383 = pnand %p381, %p382
      %p384 = pneg %p383
      // Predicated region
      $region53: #{classic_language_model.2} parent=5 // pred_check
        _
      $region54: #{classic_language_model.2} parent=5 // pred_check_branch
        %386 = sbr.rel (%p383) target = $region56
      $region55: #{classic_language_model.2} parent=5 // pred_region
        %s387 = ssub.s32 %s25, 1
        %s388 = sand.u32 %s38, 1
        %s389 = scalar_lea.sflag [#allocation6], %s388
        %s390 = sand.u32 %s38, 1
        %s391 = smul.addr %s390, 32
        %s392 = scalar_lea.vmem [#allocation5], %s391
        // Predicated region
        $region57: #{classic_language_model.2} parent=55 // pred_check
          %p393 = pneg %p51
        $region58: #{classic_language_model.2} parent=55 // pred_check_branch
          %395 = sbr.rel (%p393) target = $region60
        $region59: #{classic_language_model.2} parent=55 // pred_region
          %396 = dma.done %s389, 512
        $region60: #{classic_language_model.2} parent=55 // pred_fallthru
          _
        // Predicated region
        $region61: #{classic_language_model.2} parent=55 // pred_check
          %p397 = pneg %p72
        $region62: #{classic_language_model.2} parent=55 // pred_check_branch
          %399 = sbr.rel (%p397) target = $region64
        $region63: #{classic_language_model.2} parent=55 // pred_region
          %400 = dma.done [#allocation9], 512
        $region64: #{classic_language_model.2} parent=55 // pred_fallthru
          _
        // Predicated region
        $region65: #{classic_language_model.2} parent=55 // pred_check
          %p401 = pneg %p93
        $region66: #{classic_language_model.2} parent=55 // pred_check_branch
          %403 = sbr.rel (%p401) target = $region68
        $region67: #{classic_language_model.2} parent=55 // pred_region
          %404 = dma.done [#allocation9], 16
        $region68: #{classic_language_model.2} parent=55 // pred_fallthru
          _
        // Predicated region
        $region69: #{classic_language_model.2} parent=55 // pred_check
          %p405 = pneg %p114
        $region70: #{classic_language_model.2} parent=55 // pred_check_branch
          %407 = sbr.rel (%p405) target = $region72
        $region71: #{classic_language_model.2} parent=55 // pred_region
          %408 = dma.done [#allocation12], 512
        $region72: #{classic_language_model.2} parent=55 // pred_fallthru
          _
        // Predicated region
        $region73: #{classic_language_model.2} parent=55 // pred_check
          %p409 = pneg %p135
        $region74: #{classic_language_model.2} parent=55 // pred_check_branch
          %411 = sbr.rel (%p409) target = $region76
        $region75: #{classic_language_model.2} parent=55 // pred_region
          %412 = dma.done [#allocation12], 16
        $region76: #{classic_language_model.2} parent=55 // pred_fallthru
          _
        // Predicated region
        $region77: #{classic_language_model.2} parent=55 // pred_check
          %p413 = pneg %p156
        $region78: #{classic_language_model.2} parent=55 // pred_check_branch
          %415 = sbr.rel (%p413) target = $region80
        $region79: #{classic_language_model.2} parent=55 // pred_region
          %416 = dma.done [#allocation15], 512
        $region80: #{classic_language_model.2} parent=55 // pred_fallthru
          _
        // Predicated region
        $region81: #{classic_language_model.2} parent=55 // pred_check
          %p417 = pneg %p177
        $region82: #{classic_language_model.2} parent=55 // pred_check_branch
          %419 = sbr.rel (%p417) target = $region84
        $region83: #{classic_language_model.2} parent=55 // pred_region
          %420 = dma.done [#allocation15], 16
        $region84: #{classic_language_model.2} parent=55 // pred_fallthru
          _
        // Predicated region
        $region85: #{classic_language_model.2} parent=55 // pred_check
          %p421 = pneg %p198
        $region86: #{classic_language_model.2} parent=55 // pred_check_branch
          %423 = sbr.rel (%p421) target = $region88
        $region87: #{classic_language_model.2} parent=55 // pred_region
          %424 = dma.done [#allocation18], 512
        $region88: #{classic_language_model.2} parent=55 // pred_fallthru
          _
        // Predicated region
        $region89: #{classic_language_model.2} parent=55 // pred_check
          %p425 = pneg %p219
        $region90: #{classic_language_model.2} parent=55 // pred_check_branch
          %427 = sbr.rel (%p425) target = $region92
        $region91: #{classic_language_model.2} parent=55 // pred_region
          %428 = dma.done [#allocation18], 16
        $region92: #{classic_language_model.2} parent=55 // pred_fallthru
          _
        %s429 = sand.u32 %s38, 1
        %s430 = scalar_lea.sflag [#allocation6], %s429
        %s431 = sand.u32 %s38, 1
        %s432 = smul.addr %s431, 32
        %s433 = scalar_lea.vmem [#allocation5], %s432
        %p434 = pneg %p51
        %p435 = pneg %p48
        %p436 = pneg %p72
        %p437 = pneg %p69
        %p438 = pneg %p93
        %p439 = pneg %p90
        %p440 = pneg %p114
        %p441 = pneg %p111
        %p442 = pneg %p135
        %p443 = pneg %p132
        %p444 = pneg %p156
        %p445 = pneg %p153
        %p446 = pneg %p177
        %p447 = pneg %p174
        %p448 = pneg %p198
        %p449 = pneg %p195
        %p450 = pneg %p219
        %p451 = pneg %p216
        %p452 = pneg %p245
        %p453 = pneg %p242
        %s454 = sand.u32 %s232, 1
        %s455 = scalar_lea.sflag [#allocation7], %s454
        %s456 = sand.u32 %s232, 1
        %s457 = smul.addr %s456, 32
        %s458 = scalar_lea.vmem [#allocation20], %s457
        %s459 = smul.u32 4, %s30
        %s460 = smul.u32 4, %s30
        %p461 = scmp.eq.s32.totalorder %s30, 0
        // Predicated region
        $region93: #{classic_language_model.2} parent=55 // pred_check
          %p462 = pneg %p461
        $region94: #{classic_language_model.2} parent=55 // pred_check_branch
          %464 = sbr.rel (%p462) target = $region96
        $region95: #{classic_language_model.2} parent=55 // pred_region
          %vm465 = vcmask 261120
          %466 = vst.msk [vmem:[#allocation3] sm:$0xff] %vm465, 0.0
          %467 = vst.msk [vmem:[#allocation4] sm:$0xff] %vm465, 0.0
        $region96: #{classic_language_model.2} parent=55 // pred_fallthru
          _
        %v468 = vld [vmem:[%s392] sm:$0xff]
        %v469 = vld [vmem:[%s392 + $0x8] sm:$0xff]
        %v470 = vld [vmem:[%s392 + $0x10] sm:$0xff]
        %v471 = vld [vmem:[%s392 + $0x18] sm:$0xff]
        %v472 = vld [vmem:[#allocation8] sm:$0xff]
        %v473 = vld [vmem:[#allocation8 + $0x8] sm:$0xff]
        %v474 = vld [vmem:[#allocation8 + $0x10] sm:$0xff]
        %v475 = vld [vmem:[#allocation8 + $0x18] sm:$0xff]
        %v476 = vld [vmem:[#allocation10] sm:$0x1]
        %v478 = vlaneseq
        %v479 = vshrl.u32 %v478, 7
        %v480 = vsub.s32 0, %v479
        %v481 = vrot.slane %v476, %v480
        %vm483 = vcmask 261120
        %v485 = vsel %vm483, %v468, 0
        %v488 = vsel %vm483, %v469, 0
        %v491 = vsel %vm483, %v470, 0
        %v494 = vsel %vm483, %v471, 0
        %496 = vmatprep.subr.mxu0 0.0
        %497 = vmatpush1.msra.mxu0 %v472
        %498 = vmatprep.subr.mxu0 0.0
        %499 = vmatpush1.msra.mxu0 %v473
        %500 = vmatprep.subr.mxu0 0.0
        %501 = vmatpush1.msra.mxu0 %v474
        %502 = vmatprep.subr.mxu0 0.0
        %503 = vmatpush1.msra.mxu0 %v475
        %504 = vmatprep.subr.mxu0 0.0
        %505 = vmatpush1.msra.mxu0 0.0
        %506 = vmatprep.subr.mxu0 0.0
        %507 = vmatpush1.msra.mxu0 0.0
        %508 = vmatprep.subr.mxu0 0.0
        %509 = vmatpush1.msra.mxu0 0.0
        %510 = vmatprep.subr.mxu0 0.0
        %511 = vmatpush1.msra.mxu0 0.0
        %512 = vmatprep.subr.mxu0 0.0
        %513 = vmatpush1.msra.mxu0 0.0
        %514 = vmatprep.subr.mxu0 0.0
        %515 = vmatpush1.msra.mxu0 0.0
        %516 = vmatprep.subr.mxu0 0.0
        %517 = vmatpush1.msra.mxu0 0.0
        %518 = vmatprep.subr.mxu0 0.0
        %519 = vmatpush1.msra.mxu0 0.0
        %520 = vmatprep.subr.mxu0 0.0
        %521 = vmatpush1.msra.mxu0 0.0
        %522 = vmatprep.subr.mxu0 0.0
        %523 = vmatpush1.msra.mxu0 0.0
        %524 = vmatprep.subr.mxu0 0.0
        %525 = vmatpush1.msra.mxu0 0.0
        %526 = vmatprep.subr.mxu0 0.0
        %527 = vmatpush1.msra.mxu0 0.0
        %528 = vmatprep.subr.mxu0 0.0
        %529 = vmatpush1.msra.mxu0 0.0
        %530 = vmatprep.subr.mxu0 0.0
        %531 = vmatpush1.msra.mxu0 0.0
        %532 = vmatprep.subr.mxu0 0.0
        %533 = vmatpush1.msra.mxu0 0.0
        %534 = vmatprep.subr.mxu0 0.0
        %535 = vmatpush1.msra.mxu0 0.0
        %536 = vmatprep.subr.mxu0 0.0
        %537 = vmatpush1.msra.mxu0 0.0
        %538 = vmatprep.subr.mxu0 0.0
        %539 = vmatpush1.msra.mxu0 0.0
        %540 = vmatprep.subr.mxu0 0.0
        %541 = vmatpush1.msra.mxu0 0.0
        %542 = vmatprep.subr.mxu0 0.0
        %543 = vmatpush1.msra.mxu0 0.0
        %544 = vmatprep.subr.mxu0 0.0
        %545 = vmatpush1.msra.mxu0 0.0
        %546 = vmatprep.subr.mxu0 0.0
        %547 = vmatpush1.msra.mxu0 0.0
        %548 = vmatprep.subr.mxu0 0.0
        %549 = vmatpush1.msra.mxu0 0.0
        %550 = vmatprep.subr.mxu0 0.0
        %551 = vmatpush1.msra.mxu0 0.0
        %552 = vmatprep.subr.mxu0 0.0
        %553 = vmatpush1.msra.mxu0 0.0
        %554 = vmatprep.subr.mxu0 0.0
        %555 = vmatpush1.msra.mxu0 0.0
        %556 = vmatprep.subr.mxu0 0.0
        %557 = vmatpush1.msra.mxu0 0.0
        %558 = vmatprep.subr.mxu0 0.0
        %559 = vmatpush1.msra.mxu0 0.0
        %560 = vmatprep.mubr.f32.mxu0 0.0
        %561 = vmatmul.mubr.f32.gmra.mrb[0].mxu0 %v485
        %v562 = vpop.f32.mrb[0].mxu0
        %v563 = vadd.f32 %v481, %v562
        %v564 = vpop.f32.mrb[0].mxu0
        %565 = vmatprep.mubr.f32.mxu0 0.0
        %566 = vmatmul.mubr.f32.gmra.mrb[0].mxu0 %v488
        %v567 = vpop.f32.mrb[0].mxu0
        %v568 = vadd.f32 %v481, %v567
        %v569 = vpop.f32.mrb[0].mxu0
        %570 = vmatprep.mubr.f32.mxu0 0.0
        %571 = vmatmul.mubr.f32.gmra.mrb[0].mxu0 %v491
        %v572 = vpop.f32.mrb[0].mxu0
        %v573 = vadd.f32 %v481, %v572
        %v574 = vpop.f32.mrb[0].mxu0
        %575 = vmatprep.mubr.f32.mxu0 0.0
        %576 = vmatmul.mubr.f32.gmra.mrb[0].mxu0 %v494
        %v577 = vpop.f32.mrb[0].mxu0
        %v578 = vadd.f32 %v481, %v577
        %v579 = vpop.f32.mrb[0].mxu0
        %580 = vdwg.mxu0
        %vm581 = vcmask 785408
        %582 = vst.msk [vmem:[#allocation2] sm:$0xff] %vm581, %v563
        %583 = vst.msk [vmem:[#allocation2 + $0x8] sm:$0xff] %vm581, %v568
        %584 = vst.msk [vmem:[#allocation2 + $0x10] sm:$0xff] %vm581, %v573
        %585 = vst.msk [vmem:[#allocation2 + $0x18] sm:$0xff] %vm581, %v578
        %v586 = vld [vmem:[#allocation13] sm:$0x1]
        %v587 = vld [vmem:[#allocation16] sm:$0x1]
        %v588 = vld [vmem:[#allocation19] sm:$0x1]
        loop: start=0, step=1, limit=4
        $region97: #{classic_language_model.2} parent=55 // loop_pre_header
          _
        $region98: #{classic_language_model.2} parent=55 // loop_header
          %s590 = sphi 0, %s594
          %p591 = scmp.ge.s32.totalorder %s590, 4
        $region99: #{classic_language_model.2} parent=55 // loop_header_branch
          %593 = sbr.rel (%p591) target = $region103
        $region100: #{classic_language_model.2} parent=55 // loop_body
          %s595 = smul.u32 %s590, 8
          %s596 = scalar_lea.vmem [#allocation2], %s595
          %v597 = vld [vmem:[%s596] sm:$0xff]
          %v598 = vld [vmem:[#allocation3] sm:$0xff]
          %v599 = vld [vmem:[#allocation4] sm:$0xff]
          %v600 = vld [vmem:[#allocation11] sm:$0xff]
          %v601 = vld [vmem:[#allocation11 + $0x8] sm:$0xff]
          %v602 = vld [vmem:[#allocation11 + $0x10] sm:$0xff]
          %v603 = vld [vmem:[#allocation11 + $0x18] sm:$0xff]
          %v605 = vlaneseq
          %v606 = vshrl.u32 %v605, 7
          %v607 = vsub.s32 0, %v606
          %v608 = vrot.slane %v586, %v607
          %v611 = vsel %vm483, %v598, 0
          %613 = vmatprep.subr.mxu0 0.0
          %614 = vmatpush1.msra.mxu0 %v600
          %615 = vmatprep.subr.mxu0 0.0
          %616 = vmatpush1.msra.mxu0 %v601
          %617 = vmatprep.subr.mxu0 0.0
          %618 = vmatpush1.msra.mxu0 %v602
          %619 = vmatprep.subr.mxu0 0.0
          %620 = vmatpush1.msra.mxu0 %v603
          %621 = vmatprep.subr.mxu0 0.0
          %622 = vmatpush1.msra.mxu0 0.0
          %623 = vmatprep.subr.mxu0 0.0
          %624 = vmatpush1.msra.mxu0 0.0
          %625 = vmatprep.subr.mxu0 0.0
          %626 = vmatpush1.msra.mxu0 0.0
          %627 = vmatprep.subr.mxu0 0.0
          %628 = vmatpush1.msra.mxu0 0.0
          %629 = vmatprep.subr.mxu0 0.0
          %630 = vmatpush1.msra.mxu0 0.0
          %631 = vmatprep.subr.mxu0 0.0
          %632 = vmatpush1.msra.mxu0 0.0
          %633 = vmatprep.subr.mxu0 0.0
          %634 = vmatpush1.msra.mxu0 0.0
          %635 = vmatprep.subr.mxu0 0.0
          %636 = vmatpush1.msra.mxu0 0.0
          %637 = vmatprep.subr.mxu0 0.0
          %638 = vmatpush1.msra.mxu0 0.0
          %639 = vmatprep.subr.mxu0 0.0
          %640 = vmatpush1.msra.mxu0 0.0
          %641 = vmatprep.subr.mxu0 0.0
          %642 = vmatpush1.msra.mxu0 0.0
          %643 = vmatprep.subr.mxu0 0.0
          %644 = vmatpush1.msra.mxu0 0.0
          %645 = vmatprep.subr.mxu0 0.0
          %646 = vmatpush1.msra.mxu0 0.0
          %647 = vmatprep.subr.mxu0 0.0
          %648 = vmatpush1.msra.mxu0 0.0
          %649 = vmatprep.subr.mxu0 0.0
          %650 = vmatpush1.msra.mxu0 0.0
          %651 = vmatprep.subr.mxu0 0.0
          %652 = vmatpush1.msra.mxu0 0.0
          %653 = vmatprep.subr.mxu0 0.0
          %654 = vmatpush1.msra.mxu0 0.0
          %655 = vmatprep.subr.mxu0 0.0
          %656 = vmatpush1.msra.mxu0 0.0
          %657 = vmatprep.subr.mxu0 0.0
          %658 = vmatpush1.msra.mxu0 0.0
          %659 = vmatprep.subr.mxu0 0.0
          %660 = vmatpush1.msra.mxu0 0.0
          %661 = vmatprep.subr.mxu0 0.0
          %662 = vmatpush1.msra.mxu0 0.0
          %663 = vmatprep.subr.mxu0 0.0
          %664 = vmatpush1.msra.mxu0 0.0
          %665 = vmatprep.subr.mxu0 0.0
          %666 = vmatpush1.msra.mxu0 0.0
          %667 = vmatprep.subr.mxu0 0.0
          %668 = vmatpush1.msra.mxu0 0.0
          %669 = vmatprep.subr.mxu0 0.0
          %670 = vmatpush1.msra.mxu0 0.0
          %671 = vmatprep.subr.mxu0 0.0
          %672 = vmatpush1.msra.mxu0 0.0
          %673 = vmatprep.subr.mxu0 0.0
          %674 = vmatpush1.msra.mxu0 0.0
          %675 = vmatprep.subr.mxu0 0.0
          %676 = vmatpush1.msra.mxu0 0.0
          %677 = vmatprep.mubr.f32.mxu0 0.0
          %678 = vmatmul.mubr.f32.gmra.mrb[0].mxu0 %v611
          %v679 = vpop.f32.mrb[0].mxu0
          %v680 = vadd.f32 %v608, %v679
          %v681 = vpop.f32.mrb[0].mxu0
          %682 = vdwg.mxu0
          %v683 = vadd.f32 %v597, %v680
          %v684 = vxor.u32 %v683, 2147483648
          %v685 = vmul.f32 %v684, 1.442695
          %v686 = vpow.pop %v685
          %v687 = vadd.f32 %v686, 1.0
          %v688 = vrcp.pop %v687
          %v689 = vmul.f32 1.0, %v688
          %691 = vrot.lane.b32.xlu0 %v680, 64
          %v692 = vpop.permute.xlu0 %691
          %v694 = vmul.f32 %v689, %v692
          %696 = vrot.lane.b32.xlu0 %v694, 64
          %v697 = vpop.permute.xlu0 %696
          %v699 = vadd.f32 %v597, %v697
          %v700 = vtanh.pop %v699
          %v701 = vsub.f32 1.0, %v689
          %703 = vrot.lane.b32.xlu0 %v700, 96
          %v704 = vpop.permute.xlu0 %703
          %v706 = vmul.f32 %v701, %v704
          %707 = vrot.lane.b32.xlu0 %v598, 32
          %v708 = vpop.permute.xlu0 %707
          %v710 = vmul.f32 %v689, %v708
          %v711 = vadd.f32 %v706, %v710
          %v712 = vld [vmem:[#allocation14] sm:$0xff]
          %v713 = vld [vmem:[#allocation14 + $0x8] sm:$0xff]
          %v714 = vld [vmem:[#allocation14 + $0x10] sm:$0xff]
          %v715 = vld [vmem:[#allocation14 + $0x18] sm:$0xff]
          %v717 = vlaneseq
          %v718 = vshrl.u32 %v717, 7
          %v719 = vsub.s32 0, %v718
          %v720 = vrot.slane %v587, %v719
          %723 = vrot.lane.b32.xlu0 %v711, 96
          %v724 = vpop.permute.xlu0 %723
          %v725 = vsel %vm483, %v724, 0
          %727 = vmatprep.subr.mxu0 0.0
          %728 = vmatpush1.msra.mxu0 %v712
          %729 = vmatprep.subr.mxu0 0.0
          %730 = vmatpush1.msra.mxu0 %v713
          %731 = vmatprep.subr.mxu0 0.0
          %732 = vmatpush1.msra.mxu0 %v714
          %733 = vmatprep.subr.mxu0 0.0
          %734 = vmatpush1.msra.mxu0 %v715
          %735 = vmatprep.subr.mxu0 0.0
          %736 = vmatpush1.msra.mxu0 0.0
          %737 = vmatprep.subr.mxu0 0.0
          %738 = vmatpush1.msra.mxu0 0.0
          %739 = vmatprep.subr.mxu0 0.0
          %740 = vmatpush1.msra.mxu0 0.0
          %741 = vmatprep.subr.mxu0 0.0
          %742 = vmatpush1.msra.mxu0 0.0
          %743 = vmatprep.subr.mxu0 0.0
          %744 = vmatpush1.msra.mxu0 0.0
          %745 = vmatprep.subr.mxu0 0.0
          %746 = vmatpush1.msra.mxu0 0.0
          %747 = vmatprep.subr.mxu0 0.0
          %748 = vmatpush1.msra.mxu0 0.0
          %749 = vmatprep.subr.mxu0 0.0
          %750 = vmatpush1.msra.mxu0 0.0
          %751 = vmatprep.subr.mxu0 0.0
          %752 = vmatpush1.msra.mxu0 0.0
          %753 = vmatprep.subr.mxu0 0.0
          %754 = vmatpush1.msra.mxu0 0.0
          %755 = vmatprep.subr.mxu0 0.0
          %756 = vmatpush1.msra.mxu0 0.0
          %757 = vmatprep.subr.mxu0 0.0
          %758 = vmatpush1.msra.mxu0 0.0
          %759 = vmatprep.subr.mxu0 0.0
          %760 = vmatpush1.msra.mxu0 0.0
          %761 = vmatprep.subr.mxu0 0.0
          %762 = vmatpush1.msra.mxu0 0.0
          %763 = vmatprep.subr.mxu0 0.0
          %764 = vmatpush1.msra.mxu0 0.0
          %765 = vmatprep.subr.mxu0 0.0
          %766 = vmatpush1.msra.mxu0 0.0
          %767 = vmatprep.subr.mxu0 0.0
          %768 = vmatpush1.msra.mxu0 0.0
          %769 = vmatprep.subr.mxu0 0.0
          %770 = vmatpush1.msra.mxu0 0.0
          %771 = vmatprep.subr.mxu0 0.0
          %772 = vmatpush1.msra.mxu0 0.0
          %773 = vmatprep.subr.mxu0 0.0
          %774 = vmatpush1.msra.mxu0 0.0
          %775 = vmatprep.subr.mxu0 0.0
          %776 = vmatpush1.msra.mxu0 0.0
          %777 = vmatprep.subr.mxu0 0.0
          %778 = vmatpush1.msra.mxu0 0.0
          %779 = vmatprep.subr.mxu0 0.0
          %780 = vmatpush1.msra.mxu0 0.0
          %781 = vmatprep.subr.mxu0 0.0
          %782 = vmatpush1.msra.mxu0 0.0
          %783 = vmatprep.subr.mxu0 0.0
          %784 = vmatpush1.msra.mxu0 0.0
          %785 = vmatprep.subr.mxu0 0.0
          %786 = vmatpush1.msra.mxu0 0.0
          %787 = vmatprep.subr.mxu0 0.0
          %788 = vmatpush1.msra.mxu0 0.0
          %789 = vmatprep.subr.mxu0 0.0
          %790 = vmatpush1.msra.mxu0 0.0
          %791 = vmatprep.mubr.f32.mxu0 0.0
          %792 = vmatmul.mubr.f32.gmra.mrb[0].mxu0 %v725
          %v793 = vpop.f32.mrb[0].mxu0
          %v794 = vadd.f32 %v720, %v793
          %v795 = vpop.f32.mrb[0].mxu0
          %796 = vdwg.mxu0
          %v797 = vld [vmem:[#allocation17] sm:$0xff]
          %v798 = vld [vmem:[#allocation17 + $0x8] sm:$0xff]
          %v799 = vld [vmem:[#allocation17 + $0x10] sm:$0xff]
          %v800 = vld [vmem:[#allocation17 + $0x18] sm:$0xff]
          %v802 = vlaneseq
          %v803 = vshrl.u32 %v802, 7
          %v804 = vsub.s32 0, %v803
          %v805 = vrot.slane %v588, %v804
          %v808 = vsel %vm483, %v599, 0
          %810 = vmatprep.subr.mxu0 0.0
          %811 = vmatpush1.msra.mxu0 %v797
          %812 = vmatprep.subr.mxu0 0.0
          %813 = vmatpush1.msra.mxu0 %v798
          %814 = vmatprep.subr.mxu0 0.0
          %815 = vmatpush1.msra.mxu0 %v799
          %816 = vmatprep.subr.mxu0 0.0
          %817 = vmatpush1.msra.mxu0 %v800
          %818 = vmatprep.subr.mxu0 0.0
          %819 = vmatpush1.msra.mxu0 0.0
          %820 = vmatprep.subr.mxu0 0.0
          %821 = vmatpush1.msra.mxu0 0.0
          %822 = vmatprep.subr.mxu0 0.0
          %823 = vmatpush1.msra.mxu0 0.0
          %824 = vmatprep.subr.mxu0 0.0
          %825 = vmatpush1.msra.mxu0 0.0
          %826 = vmatprep.subr.mxu0 0.0
          %827 = vmatpush1.msra.mxu0 0.0
          %828 = vmatprep.subr.mxu0 0.0
          %829 = vmatpush1.msra.mxu0 0.0
          %830 = vmatprep.subr.mxu0 0.0
          %831 = vmatpush1.msra.mxu0 0.0
          %832 = vmatprep.subr.mxu0 0.0
          %833 = vmatpush1.msra.mxu0 0.0
          %834 = vmatprep.subr.mxu0 0.0
          %835 = vmatpush1.msra.mxu0 0.0
          %836 = vmatprep.subr.mxu0 0.0
          %837 = vmatpush1.msra.mxu0 0.0
          %838 = vmatprep.subr.mxu0 0.0
          %839 = vmatpush1.msra.mxu0 0.0
          %840 = vmatprep.subr.mxu0 0.0
          %841 = vmatpush1.msra.mxu0 0.0
          %842 = vmatprep.subr.mxu0 0.0
          %843 = vmatpush1.msra.mxu0 0.0
          %844 = vmatprep.subr.mxu0 0.0
          %845 = vmatpush1.msra.mxu0 0.0
          %846 = vmatprep.subr.mxu0 0.0
          %847 = vmatpush1.msra.mxu0 0.0
          %848 = vmatprep.subr.mxu0 0.0
          %849 = vmatpush1.msra.mxu0 0.0
          %850 = vmatprep.subr.mxu0 0.0
          %851 = vmatpush1.msra.mxu0 0.0
          %852 = vmatprep.subr.mxu0 0.0
          %853 = vmatpush1.msra.mxu0 0.0
          %854 = vmatprep.subr.mxu0 0.0
          %855 = vmatpush1.msra.mxu0 0.0
          %856 = vmatprep.subr.mxu0 0.0
          %857 = vmatpush1.msra.mxu0 0.0
          %858 = vmatprep.subr.mxu0 0.0
          %859 = vmatpush1.msra.mxu0 0.0
          %860 = vmatprep.subr.mxu0 0.0
          %861 = vmatpush1.msra.mxu0 0.0
          %862 = vmatprep.subr.mxu0 0.0
          %863 = vmatpush1.msra.mxu0 0.0
          %864 = vmatprep.subr.mxu0 0.0
          %865 = vmatpush1.msra.mxu0 0.0
          %866 = vmatprep.subr.mxu0 0.0
          %867 = vmatpush1.msra.mxu0 0.0
          %868 = vmatprep.subr.mxu0 0.0
          %869 = vmatpush1.msra.mxu0 0.0
          %870 = vmatprep.subr.mxu0 0.0
          %871 = vmatpush1.msra.mxu0 0.0
          %872 = vmatprep.subr.mxu0 0.0
          %873 = vmatpush1.msra.mxu0 0.0
          %874 = vmatprep.mubr.f32.mxu0 0.0
          %875 = vmatmul.mubr.f32.gmra.mrb[0].mxu0 %v808
          %v876 = vpop.f32.mrb[0].mxu0
          %v877 = vadd.f32 %v805, %v876
          %v878 = vpop.f32.mrb[0].mxu0
          %879 = vdwg.mxu0
          %v880 = vadd.f32 %v794, %v877
          %v881 = vxor.u32 %v880, 2147483648
          %v882 = vmul.f32 %v881, 1.442695
          %v883 = vpow.pop %v882
          %v884 = vadd.f32 %v883, 1.0
          %v885 = vrcp.pop %v884
          %v886 = vmul.f32 1.0, %v885
          %888 = vrot.lane.b32.xlu0 %v877, 64
          %v889 = vpop.permute.xlu0 %888
          %v891 = vmul.f32 %v886, %v889
          %893 = vrot.lane.b32.xlu0 %v891, 64
          %v894 = vpop.permute.xlu0 %893
          %v896 = vadd.f32 %v794, %v894
          %v897 = vtanh.pop %v896
          %v898 = vsub.f32 1.0, %v886
          %900 = vrot.lane.b32.xlu0 %v897, 96
          %v901 = vpop.permute.xlu0 %900
          %v903 = vmul.f32 %v898, %v901
          %904 = vrot.lane.b32.xlu0 %v599, 32
          %v905 = vpop.permute.xlu0 %904
          %v907 = vmul.f32 %v886, %v905
          %v908 = vadd.f32 %v903, %v907
          %910 = vst.msk [vmem:[#allocation3] sm:$0xff] %vm483, %v724
          %912 = vrot.lane.b32.xlu0 %v908, 96
          %v913 = vpop.permute.xlu0 %912
          %915 = vst.msk [vmem:[#allocation4] sm:$0xff] %vm483, %v913
          %v916 = vadd.f32 %v711, %v908
          %918 = vrot.lane.b32.xlu0 %v916, 96
          %v919 = vpop.permute.xlu0 %918
          %s921 = scalar_lea.vmem %s458, %s595 [#allocation20]
          %922 = vst.msk [vmem:[%s921] sm:$0xff] %vm483, %v919
        $region101: #{classic_language_model.2} parent=55 // loop_footer
          %s594 = sadd.s32 1, %s590
        $region102: #{classic_language_model.2} parent=55 // loop_footer_branch
          %589 = sbr.rel target = $region98
        $region103: #{classic_language_model.2} parent=55 // loop_exit
          _
        %s923 = sand.u32 %s232, 1
        %s924 = scalar_lea.sflag [#allocation7], %s923
        %s925 = sand.u32 %s232, 1
        %s926 = smul.addr %s925, 32
        %s927 = scalar_lea.vmem [#allocation20], %s926
        // Predicated region
        $region104: #{classic_language_model.2} parent=55 // pred_check
          %p928 = pneg %p242
        $region105: #{classic_language_model.2} parent=55 // pred_check_branch
          %930 = sbr.rel (%p928) target = $region107
        $region106: #{classic_language_model.2} parent=55 // pred_region
          %s931 = smul.u32 4, %s30
          %s933 = ssub.s32 512, 512
          %934 = vsyncadd %s924, %s933
          %s935 = smul.addr %s931, 128
          %s936 = scalar_lea.hbm %s9, %s935
          %s937 = sshll.u32 %s927, 4
          %s938 = int_to_ptr.vmem [resolvable:$true] %s937
          %943 = dma.vmem_to_hbm [thread:$0]  %s938, 512, %s936, %s924, 128, 128, 8
        $region107: #{classic_language_model.2} parent=55 // pred_fallthru
          _
      $region56: #{classic_language_model.2} parent=5 // pred_fallthru
        _
      %p944 = scmp.le.s32.totalorder 2, %s25
      // Predicated region
      $region108: #{classic_language_model.2} parent=5 // pred_check
        %p945 = pneg %p944
      $region109: #{classic_language_model.2} parent=5 // pred_check_branch
        %947 = sbr.rel (%p945) target = $region111
      $region110: #{classic_language_model.2} parent=5 // pred_region
        %s948 = ssub.s32 %s25, 2
        // Predicated region
        $region112: #{classic_language_model.2} parent=110 // pred_check
          %p949 = pneg %p248
        $region113: #{classic_language_model.2} parent=110 // pred_check_branch
          %951 = sbr.rel (%p949) target = $region115
        $region114: #{classic_language_model.2} parent=110 // pred_region
          %s952 = sand.u32 %s233, 1
          %s953 = scalar_lea.sflag [#allocation7], %s952
          %s954 = sand.u32 %s233, 1
          %s955 = smul.addr %s954, 32
          %s956 = scalar_lea.vmem [#allocation20], %s955
          %957 = dma.done %s953, 512
        $region115: #{classic_language_model.2} parent=110 // pred_fallthru
          _
      $region111: #{classic_language_model.2} parent=5 // pred_fallthru
        _
    $region6: #{classic_language_model.2} parent=1 // loop_footer
      %s29 = sadd.s32 1, %s25
    $region7: #{classic_language_model.2} parent=1 // loop_footer_branch
      %24 = sbr.rel target = $region3
    $region8: #{classic_language_model.2} parent=1 // loop_exit
      _
    %958 = vsyncpa [#allocation6], 1
    %s959 = scalar_lea.sflag [#allocation6], 1
    %960 = vsyncpa %s959, 1
    %961 = vsyncpa [#allocation9], 1
    %962 = vsyncpa [#allocation12], 1
    %963 = vsyncpa [#allocation15], 1
    %964 = vsyncpa [#allocation18], 1
    %965 = vsyncpa [#allocation7], 1
    %s966 = scalar_lea.sflag [#allocation7], 1
    %967 = vsyncpa %s966, 1

</llo_original>
